<compile_context>
chip_gen: v5e
topology: v5e:2x2
jax: 0.10.0
libtpu: 0.0.40
codegen_flags: <defaults>
</compile_context>

<pallas_src>
import jax
import jax.numpy as jnp
import numpy as np
from jax import lax
from jax.experimental import pallas as pl
from jax.experimental.pallas import tpu as pltpu


def _round_up(x, m):
    return ((x + m - 1) // m) * m


# ---------------------------------------------------------------------------
# Fused RDB kernel
# ---------------------------------------------------------------------------

def _make_rdb_kernel(G0, G, C, Gpad0, Gpad, W, L):
    """Fused RDB: C x (3x3 conv + ReLU) with dense concat, LFF 1x1 conv, + x."""
    # Tap t = (dy+1)*3 + (dx+1); s = flat-pixel offset of the source neighbour.
    tap_shifts = [dy * W + dx for dy in (-1, 0, 1) for dx in (-1, 0, 1)]

    def kernel(*refs):
        x_ref = refs[0]                                   # (1, Gpad0, L)
        mask_ref = refs[1]                                # (9, 1, L) border masks
        w_refs = [refs[2 + 2 * c] for c in range(C)]      # (Gpad, 9*(Gpad0+c*Gpad))
        b_refs = [refs[3 + 2 * c] for c in range(C)]      # (Gpad, 1)
        lw_ref = refs[2 + 2 * C]                          # (G0, Gpad0 + C*Gpad)
        lb_ref = refs[3 + 2 * C]                          # (G0, 1)
        o_ref = refs[4 + 2 * C]                           # (1, G0, L)
        feat_ref = refs[5 + 2 * C]                        # (Gpad0 + C*Gpad, L)
        pbuf_ref = refs[6 + 2 * C]                        # (Kmax, L)

        def append_patches(block, row_off, gp):
            # im2col for one padded channel group: 9 lane-rolled, border-masked
            # copies.  All row offsets are multiples of 8 -> aligned full stores.
            for t, s in enumerate(tap_shifts):
                if s == 0:                                # centre tap: no shift,
                    shifted = block                       # mask is all-ones
                else:
                    # want shifted[j] = block[j + s]  =>  roll by -s (mod L).
                    shifted = pltpu.roll(block, (-s) % L, axis=1) * mask_ref[t]
                pbuf_ref[row_off + t * gp:row_off + (t + 1) * gp, :] = shifted

        x = x_ref[0]                                      # (Gpad0, L)
        feat_ref[0:Gpad0, :] = x
        append_patches(x, 0, Gpad0)

        k_rows = 9 * Gpad0
        for c in range(C):
            # One conv matmul per layer: K = 9 * (#padded input channels).
            acc = jnp.dot(w_refs[c][...], pbuf_ref[0:k_rows, :],
                          preferred_element_type=jnp.float32)
            acc = jnp.maximum(acc + b_refs[c][...], 0.0)  # bias + ReLU (pad rows stay 0)
            feat_ref[Gpad0 + c * Gpad:Gpad0 + (c + 1) * Gpad, :] = acc
            if c < C - 1:                                 # only NEW channels get im2col'ed
                append_patches(acc, k_rows, Gpad)
                k_rows += 9 * Gpad

        # LFF 1x1 conv over the concatenated (padded) features + residual.
        y = jnp.dot(lw_ref[...], feat_ref[...], preferred_element_type=jnp.float32)
        y = y + lb_ref[...] + x[0:G0, :]
        o_ref[0] = y.astype(o_ref.dtype)

    return kernel


# ---------------------------------------------------------------------------
# Constant / weight preprocessing (plain JAX / numpy, outside the kernel)
# ---------------------------------------------------------------------------

def _build_border_mask(H, W, NB):
    """mask[t, 0, nb*HW + j] = 1 iff pixel j's neighbour for tap t is inside the
    image.  Depends only on j, so it is tiled across the NB folded images."""
    HW = H * W
    idx = np.arange(HW)
    yy, xx = idx // W, idx % W
    mask = np.zeros((9, HW), dtype=np.float32)
    t = 0
    for dy in (-1, 0, 1):
        for dx in (-1, 0, 1):
            valid = ((yy + dy >= 0) & (yy + dy < H) &
                     (xx + dx >= 0) & (xx + dx < W))
            mask[t, valid] = 1.0
            t += 1
    mask = np.tile(mask, (1, NB))                         # (9, NB*HW)
    return jnp.asarray(mask).reshape(9, 1, NB * HW)


def _flatten_conv_weight(w, G0, G, Gpad0, Gpad, layer):
    """OIHW (Gc, G0+layer*G, 3, 3) -> (Gpad, 9*Gpad0 + layer*9*Gpad).
    K index = group_offset + t*group_pad + ci  (t = ky*3+kx); padded channel
    columns and padded output rows are zero, matching the kernel's pbuf layout."""
    Gc = w.shape[0]
    groups = [(w[:, :G0], G0, Gpad0)]
    for k in range(layer):
        groups.append((w[:, G0 + k * G:G0 + (k + 1) * G], G, Gpad))
    pieces = []
    for wg, g, gp in groups:
        wt = jnp.transpose(wg, (0, 2, 3, 1)).reshape(Gc, 9, g)   # [o, t, ci]
        wt = jnp.pad(wt, ((0, 0), (0, 0), (0, gp - g)))
        pieces.append(wt.reshape(Gc, 9 * gp))
    wf = jnp.concatenate(pieces, axis=1)
    return jnp.pad(wf, ((0, Gpad - Gc), (0, 0)))


def _flatten_lff_weight(lff_w, G0, G, C, Gpad0, Gpad):
    """(G0, G0+C*G, 1, 1) -> (G0, Gpad0 + C*Gpad), zero cols at padded channels."""
    lw = lff_w.reshape(lff_w.shape[0], G0 + C * G)
    pieces = [jnp.pad(lw[:, :G0], ((0, 0), (0, Gpad0 - G0)))]
    for c in range(C):
        pieces.append(jnp.pad(lw[:, G0 + c * G:G0 + (c + 1) * G],
                              ((0, 0), (0, Gpad - G))))
    return jnp.concatenate(pieces, axis=1)


# ---------------------------------------------------------------------------
# Wrapper: PyTorch-style NCHW in / NCHW out
# ---------------------------------------------------------------------------

def rdb_forward(x_nchw, conv_params, lff_w, lff_b, images_per_step=None):
    """RDB.forward.

    x_nchw      : (N, G0, H, W) float32
    conv_params : list of C tuples (w, b); w is OIHW (G, G0+c*G, 3, 3), b is (G,)
    lff_w       : (G0, G0 + C*G, 1, 1)
    lff_b       : (G0,)
    images_per_step: images folded into the lane axis of one grid step.  Default
        = N (one grid step: best on single-TC v5e/v6e).  On v7x use N//2 so a
        2-step "parallel" grid feeds both TensorCores.
    """
    N, G0, H, W = x_nchw.shape
    C = len(conv_params)
    G = conv_params[0][0].shape[0]
    HW = H * W
    Gpad0 = _round_up(G0, 8)
    Gpad = _round_up(G, 8)
    Fpad = Gpad0 + C * Gpad
    Kmax = 9 * Gpad0 + max(C - 1, 0) * 9 * Gpad

    NB = N if images_per_step is None else int(images_per_step)
    if NB <= 0 or N % NB != 0:
        NB = N
    nsteps = N // NB
    L = NB * HW

    # NCHW -> (nsteps, Gpad0, NB*HW): zero-pad channels, fold NB images into the
    # lane axis (lane = nb*HW + pixel).  Cheap XLA reshapes/transpose outside.
    x_pad = jnp.pad(x_nchw.reshape(N, G0, HW), ((0, 0), (0, Gpad0 - G0), (0, 0)))
    x_fold = x_pad.reshape(nsteps, NB, Gpad0, HW).transpose(0, 2, 1, 3)
    x_fold = x_fold.reshape(nsteps, Gpad0, L)

    mask = _build_border_mask(H, W, NB)                   # (9, 1, L)

    inputs = [x_fold, mask]
    in_specs = [
        pl.BlockSpec((1, Gpad0, L), lambda n: (n, 0, 0)),
        pl.BlockSpec((9, 1, L), lambda n: (0, 0, 0)),
    ]
    for c, (w, b) in enumerate(conv_params):
        wf = _flatten_conv_weight(w, G0, G, Gpad0, Gpad, c)
        bf = jnp.pad(b, (0, Gpad - b.shape[0])).reshape(Gpad, 1)
        kc = wf.shape[1]
        inputs += [wf, bf]
        in_specs += [
            pl.BlockSpec((Gpad, kc), lambda n: (0, 0)),
            pl.BlockSpec((Gpad, 1), lambda n: (0, 0)),
        ]
    lw = _flatten_lff_weight(lff_w, G0, G, C, Gpad0, Gpad)
    lb = lff_b.reshape(G0, 1)
    inputs += [lw, lb]
    in_specs += [
        pl.BlockSpec((G0, Fpad), lambda n: (0, 0)),
        pl.BlockSpec((G0, 1), lambda n: (0, 0)),
    ]

    out_fold = pl.pallas_call(
        _make_rdb_kernel(G0, G, C, Gpad0, Gpad, W, L),
        out_shape=jax.ShapeDtypeStruct((nsteps, G0, L), jnp.float32),
        grid=(nsteps,),
        in_specs=in_specs,
        out_specs=pl.BlockSpec((1, G0, L), lambda n: (n, 0, 0)),
        scratch_shapes=[
            pltpu.VMEM((Fpad, L), jnp.float32),   # concatenated (padded) features
            pltpu.VMEM((Kmax, L), jnp.float32),   # incremental im2col patch rows
        ],
        compiler_params=pltpu.CompilerParams(
            dimension_semantics=("parallel",)),
    )(*inputs)

    out = out_fold.reshape(nsteps, G0, NB, HW).transpose(0, 2, 1, 3)
    return out.reshape(N, G0, H, W)


# ---------------------------------------------------------------------------
# Pure-JAX reference (exact f32) for the correctness check
# ---------------------------------------------------------------------------

def rdb_reference(x, conv_params, lff_w, lff_b):
    dn = ("NCHW", "OIHW", "NCHW")
    prec = lax.Precision.HIGHEST
    feat = x
    for (w, b) in conv_params:
        out = lax.conv_general_dilated(feat, w, (1, 1), "SAME",
                                       dimension_numbers=dn, precision=prec)
        out = jnp.maximum(out + b.reshape(1, -1, 1, 1), 0.0)
        feat = jnp.concatenate([feat, out], axis=1)
    y = lax.conv_general_dilated(feat, lff_w, (1, 1), "SAME",
                                 dimension_numbers=dn, precision=prec)
    return y + lff_b.reshape(1, -1, 1, 1) + x


# ---------------------------------------------------------------------------
# Main
# ---------------------------------------------------------------------------

if __name__ == "__main__":
    # RDB(growRate0=4, growRate=4, nConvLayers=3, kSize=3)
    N, G0, H, W = 2, 4, 16, 16
    G, C = 4, 3

    key = jax.random.PRNGKey(0)
    keys = jax.random.split(key, 2 * C + 3)

    x = jax.random.normal(keys[0], (N, G0, H, W), dtype=jnp.float32)

    conv_params = []
    for c in range(C):
        cin = G0 + c * G
        w = jax.random.normal(keys[1 + 2 * c], (G, cin, 3, 3),
                              dtype=jnp.float32) * 0.1
        b = jax.random.normal(keys[2 + 2 * c], (G,), dtype=jnp.float32) * 0.1
        conv_params.append((w, b))
    lff_w = jax.random.normal(keys[1 + 2 * C], (G0, G0 + C * G, 1, 1),
                              dtype=jnp.float32) * 0.1
    lff_b = jax.random.normal(keys[2 + 2 * C], (G0,), dtype=jnp.float32) * 0.1

    y = rdb_forward(x, conv_params, lff_w, lff_b)
    y = jax.block_until_ready(y)

    y_ref = rdb_reference(x, conv_params, lff_w, lff_b)
    assert y.shape == (N, G0, H, W)
    max_err = jnp.max(jnp.abs(y - y_ref))
    # Tolerance covers MXU default-precision matmul arithmetic in the kernel
    # versus the exact-f32 reference; real tap/mask/layout bugs are O(0.1..1).
    assert jnp.allclose(y, y_ref, atol=1e-2, rtol=1e-2), (
        f"Pallas RDB output mismatch vs JAX reference (max abs err {max_err})")

    print("KERNEL_OK")
</pallas_src>

<mosaic_0001>
module attributes {stable_mosaic.version = 11 : i64} {
  func.func @kernel(%arg0: i32, %arg1: memref<1x8x512xf32, #tpu.memory_space<vmem>>, %arg2: memref<9x1x512xf32, #tpu.memory_space<vmem>>, %arg3: memref<8x72xf32, #tpu.memory_space<vmem>>, %arg4: memref<8x1xf32, #tpu.memory_space<vmem>>, %arg5: memref<8x144xf32, #tpu.memory_space<vmem>>, %arg6: memref<8x1xf32, #tpu.memory_space<vmem>>, %arg7: memref<8x216xf32, #tpu.memory_space<vmem>>, %arg8: memref<8x1xf32, #tpu.memory_space<vmem>>, %arg9: memref<4x32xf32, #tpu.memory_space<vmem>>, %arg10: memref<4x1xf32, #tpu.memory_space<vmem>>, %arg11: memref<1x4x512xf32, #tpu.memory_space<vmem>>, %arg12: memref<32x512xf32, #tpu.memory_space<vmem>>, %arg13: memref<216x512xf32, #tpu.memory_space<vmem>>) attributes {dimension_semantics = [#tpu.dimension_semantics<parallel>], iteration_bounds = array<i64: 1>, scalar_prefetch = 0 : i64, scratch_operands = 2 : i64, tpu.core_type = #tpu.core_type<tc>, window_params = [{transform_indices = @transform_0, window_bounds = array<i64: 1, 8, 512>}, {pipeline_mode = #tpu.pipeline_mode<synchronous>, transform_indices = @transform_1, window_bounds = array<i64: 9, 1, 512>}, {pipeline_mode = #tpu.pipeline_mode<synchronous>, transform_indices = @transform_2, window_bounds = array<i64: 8, 72>}, {pipeline_mode = #tpu.pipeline_mode<synchronous>, transform_indices = @transform_3, window_bounds = array<i64: 8, 1>}, {pipeline_mode = #tpu.pipeline_mode<synchronous>, transform_indices = @transform_4, window_bounds = array<i64: 8, 144>}, {pipeline_mode = #tpu.pipeline_mode<synchronous>, transform_indices = @transform_5, window_bounds = array<i64: 8, 1>}, {pipeline_mode = #tpu.pipeline_mode<synchronous>, transform_indices = @transform_6, window_bounds = array<i64: 8, 216>}, {pipeline_mode = #tpu.pipeline_mode<synchronous>, transform_indices = @transform_7, window_bounds = array<i64: 8, 1>}, {pipeline_mode = #tpu.pipeline_mode<synchronous>, transform_indices = @transform_8, window_bounds = array<i64: 4, 32>}, {pipeline_mode = #tpu.pipeline_mode<synchronous>, transform_indices = @transform_9, window_bounds = array<i64: 4, 1>}, {transform_indices = @transform_10, window_bounds = array<i64: 1, 4, 512>}]} {
    %c0 = arith.constant 0 : index
    %c0_0 = arith.constant 0 : index
    %c0_1 = arith.constant 0 : index
    %0 = vector.load %arg1[%c0, %c0_0, %c0_1] : memref<1x8x512xf32, #tpu.memory_space<vmem>>, vector<1x8x512xf32>
    %1 = vector.shape_cast %0 : vector<1x8x512xf32> to vector<8x512xf32>
    %c0_2 = arith.constant 0 : index
    %c0_3 = arith.constant 0 : index
    %2 = vector.load %arg12[%c0_2, %c0_3] : memref<32x512xf32, #tpu.memory_space<vmem>>, vector<8x512xf32>
    tpu.vector_store %arg12[%c0_2, %c0_3], %1 {strides = array<i32>} : memref<32x512xf32, #tpu.memory_space<vmem>>, vector<8x512xf32>,
    %c17_i32 = arith.constant 17 : i32
    %3 = tpu.dynamic_rotate %1 by %c17_i32 dim 1 : vector<8x512xf32>, i32 -> vector<8x512xf32>
    %c0_4 = arith.constant 0 : index
    %c0_5 = arith.constant 0 : index
    %c0_6 = arith.constant 0 : index
    %4 = vector.load %arg2[%c0_4, %c0_5, %c0_6] : memref<9x1x512xf32, #tpu.memory_space<vmem>>, vector<1x1x512xf32>
    %5 = vector.shape_cast %4 : vector<1x1x512xf32> to vector<1x512xf32>
    %6 = vector.broadcast %5 : vector<1x512xf32> to vector<8x512xf32>
    %7 = arith.mulf %3, %6 : vector<8x512xf32>
    %c0_7 = arith.constant 0 : index
    %c0_8 = arith.constant 0 : index
    %8 = vector.load %arg13[%c0_7, %c0_8] : memref<216x512xf32, #tpu.memory_space<vmem>>, vector<8x512xf32>
    tpu.vector_store %arg13[%c0_7, %c0_8], %7 {strides = array<i32>} : memref<216x512xf32, #tpu.memory_space<vmem>>, vector<8x512xf32>,
    %c16_i32 = arith.constant 16 : i32
    %9 = tpu.dynamic_rotate %1 by %c16_i32 dim 1 : vector<8x512xf32>, i32 -> vector<8x512xf32>
    %c1 = arith.constant 1 : index
    %c0_9 = arith.constant 0 : index
    %c0_10 = arith.constant 0 : index
    %10 = vector.load %arg2[%c1, %c0_9, %c0_10] : memref<9x1x512xf32, #tpu.memory_space<vmem>>, vector<1x1x512xf32>
    %11 = vector.shape_cast %10 : vector<1x1x512xf32> to vector<1x512xf32>
    %12 = vector.broadcast %11 : vector<1x512xf32> to vector<8x512xf32>
    %13 = arith.mulf %9, %12 : vector<8x512xf32>
    %c8 = arith.constant 8 : index
    %c0_11 = arith.constant 0 : index
    %14 = vector.load %arg13[%c8, %c0_11] : memref<216x512xf32, #tpu.memory_space<vmem>>, vector<8x512xf32>
    tpu.vector_store %arg13[%c8, %c0_11], %13 {strides = array<i32>} : memref<216x512xf32, #tpu.memory_space<vmem>>, vector<8x512xf32>,
    %c15_i32 = arith.constant 15 : i32
    %15 = tpu.dynamic_rotate %1 by %c15_i32 dim 1 : vector<8x512xf32>, i32 -> vector<8x512xf32>
    %c2 = arith.constant 2 : index
    %c0_12 = arith.constant 0 : index
    %c0_13 = arith.constant 0 : index
    %16 = vector.load %arg2[%c2, %c0_12, %c0_13] : memref<9x1x512xf32, #tpu.memory_space<vmem>>, vector<1x1x512xf32>
    %17 = vector.shape_cast %16 : vector<1x1x512xf32> to vector<1x512xf32>
    %18 = vector.broadcast %17 : vector<1x512xf32> to vector<8x512xf32>
    %19 = arith.mulf %15, %18 : vector<8x512xf32>
    %c16 = arith.constant 16 : index
    %c0_14 = arith.constant 0 : index
    %20 = vector.load %arg13[%c16, %c0_14] : memref<216x512xf32, #tpu.memory_space<vmem>>, vector<8x512xf32>
    tpu.vector_store %arg13[%c16, %c0_14], %19 {strides = array<i32>} : memref<216x512xf32, #tpu.memory_space<vmem>>, vector<8x512xf32>,
    %c1_i32 = arith.constant 1 : i32
    %21 = tpu.dynamic_rotate %1 by %c1_i32 dim 1 : vector<8x512xf32>, i32 -> vector<8x512xf32>
    %c3 = arith.constant 3 : index
    %c0_15 = arith.constant 0 : index
    %c0_16 = arith.constant 0 : index
    %22 = vector.load %arg2[%c3, %c0_15, %c0_16] : memref<9x1x512xf32, #tpu.memory_space<vmem>>, vector<1x1x512xf32>
    %23 = vector.shape_cast %22 : vector<1x1x512xf32> to vector<1x512xf32>
    %24 = vector.broadcast %23 : vector<1x512xf32> to vector<8x512xf32>
    %25 = arith.mulf %21, %24 : vector<8x512xf32>
    %c24 = arith.constant 24 : index
    %c0_17 = arith.constant 0 : index
    %26 = vector.load %arg13[%c24, %c0_17] : memref<216x512xf32, #tpu.memory_space<vmem>>, vector<8x512xf32>
    tpu.vector_store %arg13[%c24, %c0_17], %25 {strides = array<i32>} : memref<216x512xf32, #tpu.memory_space<vmem>>, vector<8x512xf32>,
    %c32 = arith.constant 32 : index
    %c0_18 = arith.constant 0 : index
    %27 = vector.load %arg13[%c32, %c0_18] : memref<216x512xf32, #tpu.memory_space<vmem>>, vector<8x512xf32>
    tpu.vector_store %arg13[%c32, %c0_18], %1 {strides = array<i32>} : memref<216x512xf32, #tpu.memory_space<vmem>>, vector<8x512xf32>,
    %c511_i32 = arith.constant 511 : i32
    %28 = tpu.dynamic_rotate %1 by %c511_i32 dim 1 : vector<8x512xf32>, i32 -> vector<8x512xf32>
    %c5 = arith.constant 5 : index
    %c0_19 = arith.constant 0 : index
    %c0_20 = arith.constant 0 : index
    %29 = vector.load %arg2[%c5, %c0_19, %c0_20] : memref<9x1x512xf32, #tpu.memory_space<vmem>>, vector<1x1x512xf32>
    %30 = vector.shape_cast %29 : vector<1x1x512xf32> to vector<1x512xf32>
    %31 = vector.broadcast %30 : vector<1x512xf32> to vector<8x512xf32>
    %32 = arith.mulf %28, %31 : vector<8x512xf32>
    %c40 = arith.constant 40 : index
    %c0_21 = arith.constant 0 : index
    %33 = vector.load %arg13[%c40, %c0_21] : memref<216x512xf32, #tpu.memory_space<vmem>>, vector<8x512xf32>
    tpu.vector_store %arg13[%c40, %c0_21], %32 {strides = array<i32>} : memref<216x512xf32, #tpu.memory_space<vmem>>, vector<8x512xf32>,
    %c497_i32 = arith.constant 497 : i32
    %34 = tpu.dynamic_rotate %1 by %c497_i32 dim 1 : vector<8x512xf32>, i32 -> vector<8x512xf32>
    %c6 = arith.constant 6 : index
    %c0_22 = arith.constant 0 : index
    %c0_23 = arith.constant 0 : index
    %35 = vector.load %arg2[%c6, %c0_22, %c0_23] : memref<9x1x512xf32, #tpu.memory_space<vmem>>, vector<1x1x512xf32>
    %36 = vector.shape_cast %35 : vector<1x1x512xf32> to vector<1x512xf32>
    %37 = vector.broadcast %36 : vector<1x512xf32> to vector<8x512xf32>
    %38 = arith.mulf %34, %37 : vector<8x512xf32>
    %c48 = arith.constant 48 : index
    %c0_24 = arith.constant 0 : index
    %39 = vector.load %arg13[%c48, %c0_24] : memref<216x512xf32, #tpu.memory_space<vmem>>, vector<8x512xf32>
    tpu.vector_store %arg13[%c48, %c0_24], %38 {strides = array<i32>} : memref<216x512xf32, #tpu.memory_space<vmem>>, vector<8x512xf32>,
    %c496_i32 = arith.constant 496 : i32
    %40 = tpu.dynamic_rotate %1 by %c496_i32 dim 1 : vector<8x512xf32>, i32 -> vector<8x512xf32>
    %c7 = arith.constant 7 : index
    %c0_25 = arith.constant 0 : index
    %c0_26 = arith.constant 0 : index
    %41 = vector.load %arg2[%c7, %c0_25, %c0_26] : memref<9x1x512xf32, #tpu.memory_space<vmem>>, vector<1x1x512xf32>
    %42 = vector.shape_cast %41 : vector<1x1x512xf32> to vector<1x512xf32>
    %43 = vector.broadcast %42 : vector<1x512xf32> to vector<8x512xf32>
    %44 = arith.mulf %40, %43 : vector<8x512xf32>
    %c56 = arith.constant 56 : index
    %c0_27 = arith.constant 0 : index
    %45 = vector.load %arg13[%c56, %c0_27] : memref<216x512xf32, #tpu.memory_space<vmem>>, vector<8x512xf32>
    tpu.vector_store %arg13[%c56, %c0_27], %44 {strides = array<i32>} : memref<216x512xf32, #tpu.memory_space<vmem>>, vector<8x512xf32>,
    %c495_i32 = arith.constant 495 : i32
    %46 = tpu.dynamic_rotate %1 by %c495_i32 dim 1 : vector<8x512xf32>, i32 -> vector<8x512xf32>
    %c8_28 = arith.constant 8 : index
    %c0_29 = arith.constant 0 : index
    %c0_30 = arith.constant 0 : index
    %47 = vector.load %arg2[%c8_28, %c0_29, %c0_30] : memref<9x1x512xf32, #tpu.memory_space<vmem>>, vector<1x1x512xf32>
    %48 = vector.shape_cast %47 : vector<1x1x512xf32> to vector<1x512xf32>
    %49 = vector.broadcast %48 : vector<1x512xf32> to vector<8x512xf32>
    %50 = arith.mulf %46, %49 : vector<8x512xf32>
    %c64 = arith.constant 64 : index
    %c0_31 = arith.constant 0 : index
    %51 = vector.load %arg13[%c64, %c0_31] : memref<216x512xf32, #tpu.memory_space<vmem>>, vector<8x512xf32>
    tpu.vector_store %arg13[%c64, %c0_31], %50 {strides = array<i32>} : memref<216x512xf32, #tpu.memory_space<vmem>>, vector<8x512xf32>,
    %c0_32 = arith.constant 0 : index
    %c0_33 = arith.constant 0 : index
    %52 = vector.load %arg3[%c0_32, %c0_33] : memref<8x72xf32, #tpu.memory_space<vmem>>, vector<8x72xf32>
    %c0_34 = arith.constant 0 : index
    %c0_35 = arith.constant 0 : index
    %53 = vector.load %arg13[%c0_34, %c0_35] : memref<216x512xf32, #tpu.memory_space<vmem>>, vector<72x512xf32>
    %cst = arith.constant dense<0.000000e+00> : vector<8x512xf32>
    %54 = tpu.matmul %52, %53, %cst {dimension_numbers = #tpu.dot_dimension_numbers<[1], [0], [0], [1], [0, 0, 1, 1], [], []>} : vector<8x72xf32>, vector<72x512xf32>, vector<8x512xf32> -> vector<8x512xf32>
    %c0_36 = arith.constant 0 : index
    %c0_37 = arith.constant 0 : index
    %55 = vector.load %arg4[%c0_36, %c0_37] : memref<8x1xf32, #tpu.memory_space<vmem>>, vector<8x1xf32>
    %56 = vector.broadcast %55 : vector<8x1xf32> to vector<8x512xf32>
    %57 = arith.addf %54, %56 : vector<8x512xf32>
    %cst_38 = arith.constant 0.000000e+00 : f32
    %58 = vector.broadcast %cst_38 : f32 to vector<8x512xf32>
    %59 = arith.maximumf %57, %58 : vector<8x512xf32>
    %c8_39 = arith.constant 8 : index
    %c0_40 = arith.constant 0 : index
    %60 = vector.load %arg12[%c8_39, %c0_40] : memref<32x512xf32, #tpu.memory_space<vmem>>, vector<8x512xf32>
    tpu.vector_store %arg12[%c8_39, %c0_40], %59 {strides = array<i32>} : memref<32x512xf32, #tpu.memory_space<vmem>>, vector<8x512xf32>,
    %c17_i32_41 = arith.constant 17 : i32
    %61 = tpu.dynamic_rotate %59 by %c17_i32_41 dim 1 : vector<8x512xf32>, i32 -> vector<8x512xf32>
    %c0_42 = arith.constant 0 : index
    %c0_43 = arith.constant 0 : index
    %c0_44 = arith.constant 0 : index
    %62 = vector.load %arg2[%c0_42, %c0_43, %c0_44] : memref<9x1x512xf32, #tpu.memory_space<vmem>>, vector<1x1x512xf32>
    %63 = vector.shape_cast %62 : vector<1x1x512xf32> to vector<1x512xf32>
    %64 = vector.broadcast %63 : vector<1x512xf32> to vector<8x512xf32>
    %65 = arith.mulf %61, %64 : vector<8x512xf32>
    %c72 = arith.constant 72 : index
    %c0_45 = arith.constant 0 : index
    %66 = vector.load %arg13[%c72, %c0_45] : memref<216x512xf32, #tpu.memory_space<vmem>>, vector<8x512xf32>
    tpu.vector_store %arg13[%c72, %c0_45], %65 {strides = array<i32>} : memref<216x512xf32, #tpu.memory_space<vmem>>, vector<8x512xf32>,
    %c16_i32_46 = arith.constant 16 : i32
    %67 = tpu.dynamic_rotate %59 by %c16_i32_46 dim 1 : vector<8x512xf32>, i32 -> vector<8x512xf32>
    %c1_47 = arith.constant 1 : index
    %c0_48 = arith.constant 0 : index
    %c0_49 = arith.constant 0 : index
    %68 = vector.load %arg2[%c1_47, %c0_48, %c0_49] : memref<9x1x512xf32, #tpu.memory_space<vmem>>, vector<1x1x512xf32>
    %69 = vector.shape_cast %68 : vector<1x1x512xf32> to vector<1x512xf32>
    %70 = vector.broadcast %69 : vector<1x512xf32> to vector<8x512xf32>
    %71 = arith.mulf %67, %70 : vector<8x512xf32>
    %c80 = arith.constant 80 : index
    %c0_50 = arith.constant 0 : index
    %72 = vector.load %arg13[%c80, %c0_50] : memref<216x512xf32, #tpu.memory_space<vmem>>, vector<8x512xf32>
    tpu.vector_store %arg13[%c80, %c0_50], %71 {strides = array<i32>} : memref<216x512xf32, #tpu.memory_space<vmem>>, vector<8x512xf32>,
    %c15_i32_51 = arith.constant 15 : i32
    %73 = tpu.dynamic_rotate %59 by %c15_i32_51 dim 1 : vector<8x512xf32>, i32 -> vector<8x512xf32>
    %c2_52 = arith.constant 2 : index
    %c0_53 = arith.constant 0 : index
    %c0_54 = arith.constant 0 : index
    %74 = vector.load %arg2[%c2_52, %c0_53, %c0_54] : memref<9x1x512xf32, #tpu.memory_space<vmem>>, vector<1x1x512xf32>
    %75 = vector.shape_cast %74 : vector<1x1x512xf32> to vector<1x512xf32>
    %76 = vector.broadcast %75 : vector<1x512xf32> to vector<8x512xf32>
    %77 = arith.mulf %73, %76 : vector<8x512xf32>
    %c88 = arith.constant 88 : index
    %c0_55 = arith.constant 0 : index
    %78 = vector.load %arg13[%c88, %c0_55] : memref<216x512xf32, #tpu.memory_space<vmem>>, vector<8x512xf32>
    tpu.vector_store %arg13[%c88, %c0_55], %77 {strides = array<i32>} : memref<216x512xf32, #tpu.memory_space<vmem>>, vector<8x512xf32>,
    %c1_i32_56 = arith.constant 1 : i32
    %79 = tpu.dynamic_rotate %59 by %c1_i32_56 dim 1 : vector<8x512xf32>, i32 -> vector<8x512xf32>
    %c3_57 = arith.constant 3 : index
    %c0_58 = arith.constant 0 : index
    %c0_59 = arith.constant 0 : index
    %80 = vector.load %arg2[%c3_57, %c0_58, %c0_59] : memref<9x1x512xf32, #tpu.memory_space<vmem>>, vector<1x1x512xf32>
    %81 = vector.shape_cast %80 : vector<1x1x512xf32> to vector<1x512xf32>
    %82 = vector.broadcast %81 : vector<1x512xf32> to vector<8x512xf32>
    %83 = arith.mulf %79, %82 : vector<8x512xf32>
    %c96 = arith.constant 96 : index
    %c0_60 = arith.constant 0 : index
    %84 = vector.load %arg13[%c96, %c0_60] : memref<216x512xf32, #tpu.memory_space<vmem>>, vector<8x512xf32>
    tpu.vector_store %arg13[%c96, %c0_60], %83 {strides = array<i32>} : memref<216x512xf32, #tpu.memory_space<vmem>>, vector<8x512xf32>,
    %c104 = arith.constant 104 : index
    %c0_61 = arith.constant 0 : index
    %85 = vector.load %arg13[%c104, %c0_61] : memref<216x512xf32, #tpu.memory_space<vmem>>, vector<8x512xf32>
    tpu.vector_store %arg13[%c104, %c0_61], %59 {strides = array<i32>} : memref<216x512xf32, #tpu.memory_space<vmem>>, vector<8x512xf32>,
    %c511_i32_62 = arith.constant 511 : i32
    %86 = tpu.dynamic_rotate %59 by %c511_i32_62 dim 1 : vector<8x512xf32>, i32 -> vector<8x512xf32>
    %c5_63 = arith.constant 5 : index
    %c0_64 = arith.constant 0 : index
    %c0_65 = arith.constant 0 : index
    %87 = vector.load %arg2[%c5_63, %c0_64, %c0_65] : memref<9x1x512xf32, #tpu.memory_space<vmem>>, vector<1x1x512xf32>
    %88 = vector.shape_cast %87 : vector<1x1x512xf32> to vector<1x512xf32>
    %89 = vector.broadcast %88 : vector<1x512xf32> to vector<8x512xf32>
    %90 = arith.mulf %86, %89 : vector<8x512xf32>
    %c112 = arith.constant 112 : index
    %c0_66 = arith.constant 0 : index
    %91 = vector.load %arg13[%c112, %c0_66] : memref<216x512xf32, #tpu.memory_space<vmem>>, vector<8x512xf32>
    tpu.vector_store %arg13[%c112, %c0_66], %90 {strides = array<i32>} : memref<216x512xf32, #tpu.memory_space<vmem>>, vector<8x512xf32>,
    %c497_i32_67 = arith.constant 497 : i32
    %92 = tpu.dynamic_rotate %59 by %c497_i32_67 dim 1 : vector<8x512xf32>, i32 -> vector<8x512xf32>
    %c6_68 = arith.constant 6 : index
    %c0_69 = arith.constant 0 : index
    %c0_70 = arith.constant 0 : index
    %93 = vector.load %arg2[%c6_68, %c0_69, %c0_70] : memref<9x1x512xf32, #tpu.memory_space<vmem>>, vector<1x1x512xf32>
    %94 = vector.shape_cast %93 : vector<1x1x512xf32> to vector<1x512xf32>
    %95 = vector.broadcast %94 : vector<1x512xf32> to vector<8x512xf32>
    %96 = arith.mulf %92, %95 : vector<8x512xf32>
    %c120 = arith.constant 120 : index
    %c0_71 = arith.constant 0 : index
    %97 = vector.load %arg13[%c120, %c0_71] : memref<216x512xf32, #tpu.memory_space<vmem>>, vector<8x512xf32>
    tpu.vector_store %arg13[%c120, %c0_71], %96 {strides = array<i32>} : memref<216x512xf32, #tpu.memory_space<vmem>>, vector<8x512xf32>,
    %c496_i32_72 = arith.constant 496 : i32
    %98 = tpu.dynamic_rotate %59 by %c496_i32_72 dim 1 : vector<8x512xf32>, i32 -> vector<8x512xf32>
    %c7_73 = arith.constant 7 : index
    %c0_74 = arith.constant 0 : index
    %c0_75 = arith.constant 0 : index
    %99 = vector.load %arg2[%c7_73, %c0_74, %c0_75] : memref<9x1x512xf32, #tpu.memory_space<vmem>>, vector<1x1x512xf32>
    %100 = vector.shape_cast %99 : vector<1x1x512xf32> to vector<1x512xf32>
    %101 = vector.broadcast %100 : vector<1x512xf32> to vector<8x512xf32>
    %102 = arith.mulf %98, %101 : vector<8x512xf32>
    %c128 = arith.constant 128 : index
    %c0_76 = arith.constant 0 : index
    %103 = vector.load %arg13[%c128, %c0_76] : memref<216x512xf32, #tpu.memory_space<vmem>>, vector<8x512xf32>
    tpu.vector_store %arg13[%c128, %c0_76], %102 {strides = array<i32>} : memref<216x512xf32, #tpu.memory_space<vmem>>, vector<8x512xf32>,
    %c495_i32_77 = arith.constant 495 : i32
    %104 = tpu.dynamic_rotate %59 by %c495_i32_77 dim 1 : vector<8x512xf32>, i32 -> vector<8x512xf32>
    %c8_78 = arith.constant 8 : index
    %c0_79 = arith.constant 0 : index
    %c0_80 = arith.constant 0 : index
    %105 = vector.load %arg2[%c8_78, %c0_79, %c0_80] : memref<9x1x512xf32, #tpu.memory_space<vmem>>, vector<1x1x512xf32>
    %106 = vector.shape_cast %105 : vector<1x1x512xf32> to vector<1x512xf32>
    %107 = vector.broadcast %106 : vector<1x512xf32> to vector<8x512xf32>
    %108 = arith.mulf %104, %107 : vector<8x512xf32>
    %c136 = arith.constant 136 : index
    %c0_81 = arith.constant 0 : index
    %109 = vector.load %arg13[%c136, %c0_81] : memref<216x512xf32, #tpu.memory_space<vmem>>, vector<8x512xf32>
    tpu.vector_store %arg13[%c136, %c0_81], %108 {strides = array<i32>} : memref<216x512xf32, #tpu.memory_space<vmem>>, vector<8x512xf32>,
    %c0_82 = arith.constant 0 : index
    %c0_83 = arith.constant 0 : index
    %110 = vector.load %arg5[%c0_82, %c0_83] : memref<8x144xf32, #tpu.memory_space<vmem>>, vector<8x144xf32>
    %c0_84 = arith.constant 0 : index
    %c0_85 = arith.constant 0 : index
    %111 = vector.load %arg13[%c0_84, %c0_85] : memref<216x512xf32, #tpu.memory_space<vmem>>, vector<144x512xf32>
    %cst_86 = arith.constant dense<0.000000e+00> : vector<8x512xf32>
    %112 = tpu.matmul %110, %111, %cst_86 {dimension_numbers = #tpu.dot_dimension_numbers<[1], [0], [0], [1], [0, 0, 1, 1], [], []>} : vector<8x144xf32>, vector<144x512xf32>, vector<8x512xf32> -> vector<8x512xf32>
    %c0_87 = arith.constant 0 : index
    %c0_88 = arith.constant 0 : index
    %113 = vector.load %arg6[%c0_87, %c0_88] : memref<8x1xf32, #tpu.memory_space<vmem>>, vector<8x1xf32>
    %114 = vector.broadcast %113 : vector<8x1xf32> to vector<8x512xf32>
    %115 = arith.addf %112, %114 : vector<8x512xf32>
    %cst_89 = arith.constant 0.000000e+00 : f32
    %116 = vector.broadcast %cst_89 : f32 to vector<8x512xf32>
    %117 = arith.maximumf %115, %116 : vector<8x512xf32>
    %c16_90 = arith.constant 16 : index
    %c0_91 = arith.constant 0 : index
    %118 = vector.load %arg12[%c16_90, %c0_91] : memref<32x512xf32, #tpu.memory_space<vmem>>, vector<8x512xf32>
    tpu.vector_store %arg12[%c16_90, %c0_91], %117 {strides = array<i32>} : memref<32x512xf32, #tpu.memory_space<vmem>>, vector<8x512xf32>,
    %c17_i32_92 = arith.constant 17 : i32
    %119 = tpu.dynamic_rotate %117 by %c17_i32_92 dim 1 : vector<8x512xf32>, i32 -> vector<8x512xf32>
    %c0_93 = arith.constant 0 : index
    %c0_94 = arith.constant 0 : index
    %c0_95 = arith.constant 0 : index
    %120 = vector.load %arg2[%c0_93, %c0_94, %c0_95] : memref<9x1x512xf32, #tpu.memory_space<vmem>>, vector<1x1x512xf32>
    %121 = vector.shape_cast %120 : vector<1x1x512xf32> to vector<1x512xf32>
    %122 = vector.broadcast %121 : vector<1x512xf32> to vector<8x512xf32>
    %123 = arith.mulf %119, %122 : vector<8x512xf32>
    %c144 = arith.constant 144 : index
    %c0_96 = arith.constant 0 : index
    %124 = vector.load %arg13[%c144, %c0_96] : memref<216x512xf32, #tpu.memory_space<vmem>>, vector<8x512xf32>
    tpu.vector_store %arg13[%c144, %c0_96], %123 {strides = array<i32>} : memref<216x512xf32, #tpu.memory_space<vmem>>, vector<8x512xf32>,
    %c16_i32_97 = arith.constant 16 : i32
    %125 = tpu.dynamic_rotate %117 by %c16_i32_97 dim 1 : vector<8x512xf32>, i32 -> vector<8x512xf32>
    %c1_98 = arith.constant 1 : index
    %c0_99 = arith.constant 0 : index
    %c0_100 = arith.constant 0 : index
    %126 = vector.load %arg2[%c1_98, %c0_99, %c0_100] : memref<9x1x512xf32, #tpu.memory_space<vmem>>, vector<1x1x512xf32>
    %127 = vector.shape_cast %126 : vector<1x1x512xf32> to vector<1x512xf32>
    %128 = vector.broadcast %127 : vector<1x512xf32> to vector<8x512xf32>
    %129 = arith.mulf %125, %128 : vector<8x512xf32>
    %c152 = arith.constant 152 : index
    %c0_101 = arith.constant 0 : index
    %130 = vector.load %arg13[%c152, %c0_101] : memref<216x512xf32, #tpu.memory_space<vmem>>, vector<8x512xf32>
    tpu.vector_store %arg13[%c152, %c0_101], %129 {strides = array<i32>} : memref<216x512xf32, #tpu.memory_space<vmem>>, vector<8x512xf32>,
    %c15_i32_102 = arith.constant 15 : i32
    %131 = tpu.dynamic_rotate %117 by %c15_i32_102 dim 1 : vector<8x512xf32>, i32 -> vector<8x512xf32>
    %c2_103 = arith.constant 2 : index
    %c0_104 = arith.constant 0 : index
    %c0_105 = arith.constant 0 : index
    %132 = vector.load %arg2[%c2_103, %c0_104, %c0_105] : memref<9x1x512xf32, #tpu.memory_space<vmem>>, vector<1x1x512xf32>
    %133 = vector.shape_cast %132 : vector<1x1x512xf32> to vector<1x512xf32>
    %134 = vector.broadcast %133 : vector<1x512xf32> to vector<8x512xf32>
    %135 = arith.mulf %131, %134 : vector<8x512xf32>
    %c160 = arith.constant 160 : index
    %c0_106 = arith.constant 0 : index
    %136 = vector.load %arg13[%c160, %c0_106] : memref<216x512xf32, #tpu.memory_space<vmem>>, vector<8x512xf32>
    tpu.vector_store %arg13[%c160, %c0_106], %135 {strides = array<i32>} : memref<216x512xf32, #tpu.memory_space<vmem>>, vector<8x512xf32>,
    %c1_i32_107 = arith.constant 1 : i32
    %137 = tpu.dynamic_rotate %117 by %c1_i32_107 dim 1 : vector<8x512xf32>, i32 -> vector<8x512xf32>
    %c3_108 = arith.constant 3 : index
    %c0_109 = arith.constant 0 : index
    %c0_110 = arith.constant 0 : index
    %138 = vector.load %arg2[%c3_108, %c0_109, %c0_110] : memref<9x1x512xf32, #tpu.memory_space<vmem>>, vector<1x1x512xf32>
    %139 = vector.shape_cast %138 : vector<1x1x512xf32> to vector<1x512xf32>
    %140 = vector.broadcast %139 : vector<1x512xf32> to vector<8x512xf32>
    %141 = arith.mulf %137, %140 : vector<8x512xf32>
    %c168 = arith.constant 168 : index
    %c0_111 = arith.constant 0 : index
    %142 = vector.load %arg13[%c168, %c0_111] : memref<216x512xf32, #tpu.memory_space<vmem>>, vector<8x512xf32>
    tpu.vector_store %arg13[%c168, %c0_111], %141 {strides = array<i32>} : memref<216x512xf32, #tpu.memory_space<vmem>>, vector<8x512xf32>,
    %c176 = arith.constant 176 : index
    %c0_112 = arith.constant 0 : index
    %143 = vector.load %arg13[%c176, %c0_112] : memref<216x512xf32, #tpu.memory_space<vmem>>, vector<8x512xf32>
    tpu.vector_store %arg13[%c176, %c0_112], %117 {strides = array<i32>} : memref<216x512xf32, #tpu.memory_space<vmem>>, vector<8x512xf32>,
    %c511_i32_113 = arith.constant 511 : i32
    %144 = tpu.dynamic_rotate %117 by %c511_i32_113 dim 1 : vector<8x512xf32>, i32 -> vector<8x512xf32>
    %c5_114 = arith.constant 5 : index
    %c0_115 = arith.constant 0 : index
    %c0_116 = arith.constant 0 : index
    %145 = vector.load %arg2[%c5_114, %c0_115, %c0_116] : memref<9x1x512xf32, #tpu.memory_space<vmem>>, vector<1x1x512xf32>
    %146 = vector.shape_cast %145 : vector<1x1x512xf32> to vector<1x512xf32>
    %147 = vector.broadcast %146 : vector<1x512xf32> to vector<8x512xf32>
    %148 = arith.mulf %144, %147 : vector<8x512xf32>
    %c184 = arith.constant 184 : index
    %c0_117 = arith.constant 0 : index
    %149 = vector.load %arg13[%c184, %c0_117] : memref<216x512xf32, #tpu.memory_space<vmem>>, vector<8x512xf32>
    tpu.vector_store %arg13[%c184, %c0_117], %148 {strides = array<i32>} : memref<216x512xf32, #tpu.memory_space<vmem>>, vector<8x512xf32>,
    %c497_i32_118 = arith.constant 497 : i32
    %150 = tpu.dynamic_rotate %117 by %c497_i32_118 dim 1 : vector<8x512xf32>, i32 -> vector<8x512xf32>
    %c6_119 = arith.constant 6 : index
    %c0_120 = arith.constant 0 : index
    %c0_121 = arith.constant 0 : index
    %151 = vector.load %arg2[%c6_119, %c0_120, %c0_121] : memref<9x1x512xf32, #tpu.memory_space<vmem>>, vector<1x1x512xf32>
    %152 = vector.shape_cast %151 : vector<1x1x512xf32> to vector<1x512xf32>
    %153 = vector.broadcast %152 : vector<1x512xf32> to vector<8x512xf32>
    %154 = arith.mulf %150, %153 : vector<8x512xf32>
    %c192 = arith.constant 192 : index
    %c0_122 = arith.constant 0 : index
    %155 = vector.load %arg13[%c192, %c0_122] : memref<216x512xf32, #tpu.memory_space<vmem>>, vector<8x512xf32>
    tpu.vector_store %arg13[%c192, %c0_122], %154 {strides = array<i32>} : memref<216x512xf32, #tpu.memory_space<vmem>>, vector<8x512xf32>,
    %c496_i32_123 = arith.constant 496 : i32
    %156 = tpu.dynamic_rotate %117 by %c496_i32_123 dim 1 : vector<8x512xf32>, i32 -> vector<8x512xf32>
    %c7_124 = arith.constant 7 : index
    %c0_125 = arith.constant 0 : index
    %c0_126 = arith.constant 0 : index
    %157 = vector.load %arg2[%c7_124, %c0_125, %c0_126] : memref<9x1x512xf32, #tpu.memory_space<vmem>>, vector<1x1x512xf32>
    %158 = vector.shape_cast %157 : vector<1x1x512xf32> to vector<1x512xf32>
    %159 = vector.broadcast %158 : vector<1x512xf32> to vector<8x512xf32>
    %160 = arith.mulf %156, %159 : vector<8x512xf32>
    %c200 = arith.constant 200 : index
    %c0_127 = arith.constant 0 : index
    %161 = vector.load %arg13[%c200, %c0_127] : memref<216x512xf32, #tpu.memory_space<vmem>>, vector<8x512xf32>
    tpu.vector_store %arg13[%c200, %c0_127], %160 {strides = array<i32>} : memref<216x512xf32, #tpu.memory_space<vmem>>, vector<8x512xf32>,
    %c495_i32_128 = arith.constant 495 : i32
    %162 = tpu.dynamic_rotate %117 by %c495_i32_128 dim 1 : vector<8x512xf32>, i32 -> vector<8x512xf32>
    %c8_129 = arith.constant 8 : index
    %c0_130 = arith.constant 0 : index
    %c0_131 = arith.constant 0 : index
    %163 = vector.load %arg2[%c8_129, %c0_130, %c0_131] : memref<9x1x512xf32, #tpu.memory_space<vmem>>, vector<1x1x512xf32>
    %164 = vector.shape_cast %163 : vector<1x1x512xf32> to vector<1x512xf32>
    %165 = vector.broadcast %164 : vector<1x512xf32> to vector<8x512xf32>
    %166 = arith.mulf %162, %165 : vector<8x512xf32>
    %c208 = arith.constant 208 : index
    %c0_132 = arith.constant 0 : index
    %167 = vector.load %arg13[%c208, %c0_132] : memref<216x512xf32, #tpu.memory_space<vmem>>, vector<8x512xf32>
    tpu.vector_store %arg13[%c208, %c0_132], %166 {strides = array<i32>} : memref<216x512xf32, #tpu.memory_space<vmem>>, vector<8x512xf32>,
    %c0_133 = arith.constant 0 : index
    %c0_134 = arith.constant 0 : index
    %168 = vector.load %arg7[%c0_133, %c0_134] : memref<8x216xf32, #tpu.memory_space<vmem>>, vector<8x216xf32>
    %c0_135 = arith.constant 0 : index
    %c0_136 = arith.constant 0 : index
    %169 = vector.load %arg13[%c0_135, %c0_136] : memref<216x512xf32, #tpu.memory_space<vmem>>, vector<216x512xf32>
    %cst_137 = arith.constant dense<0.000000e+00> : vector<8x512xf32>
    %170 = tpu.matmul %168, %169, %cst_137 {dimension_numbers = #tpu.dot_dimension_numbers<[1], [0], [0], [1], [0, 0, 1, 1], [], []>} : vector<8x216xf32>, vector<216x512xf32>, vector<8x512xf32> -> vector<8x512xf32>
    %c0_138 = arith.constant 0 : index
    %c0_139 = arith.constant 0 : index
    %171 = vector.load %arg8[%c0_138, %c0_139] : memref<8x1xf32, #tpu.memory_space<vmem>>, vector<8x1xf32>
    %172 = vector.broadcast %171 : vector<8x1xf32> to vector<8x512xf32>
    %173 = arith.addf %170, %172 : vector<8x512xf32>
    %cst_140 = arith.constant 0.000000e+00 : f32
    %174 = vector.broadcast %cst_140 : f32 to vector<8x512xf32>
    %175 = arith.maximumf %173, %174 : vector<8x512xf32>
    %c24_141 = arith.constant 24 : index
    %c0_142 = arith.constant 0 : index
    %176 = vector.load %arg12[%c24_141, %c0_142] : memref<32x512xf32, #tpu.memory_space<vmem>>, vector<8x512xf32>
    tpu.vector_store %arg12[%c24_141, %c0_142], %175 {strides = array<i32>} : memref<32x512xf32, #tpu.memory_space<vmem>>, vector<8x512xf32>,
    %c0_143 = arith.constant 0 : index
    %c0_144 = arith.constant 0 : index
    %177 = vector.load %arg9[%c0_143, %c0_144] : memref<4x32xf32, #tpu.memory_space<vmem>>, vector<4x32xf32>
    %c0_145 = arith.constant 0 : index
    %c0_146 = arith.constant 0 : index
    %178 = vector.load %arg12[%c0_145, %c0_146] : memref<32x512xf32, #tpu.memory_space<vmem>>, vector<32x512xf32>
    %cst_147 = arith.constant dense<0.000000e+00> : vector<4x512xf32>
    %179 = tpu.matmul %177, %178, %cst_147 {dimension_numbers = #tpu.dot_dimension_numbers<[1], [0], [0], [1], [0, 0, 1, 1], [], []>} : vector<4x32xf32>, vector<32x512xf32>, vector<4x512xf32> -> vector<4x512xf32>
    %c0_148 = arith.constant 0 : index
    %c0_149 = arith.constant 0 : index
    %180 = vector.load %arg10[%c0_148, %c0_149] : memref<4x1xf32, #tpu.memory_space<vmem>>, vector<4x1xf32>
    %181 = vector.broadcast %180 : vector<4x1xf32> to vector<4x512xf32>
    %182 = arith.addf %179, %181 : vector<4x512xf32>
    %183 = vector.extract_strided_slice %1 {offsets = [0, 0], sizes = [4, 512], strides = [1, 1]} : vector<8x512xf32> to vector<4x512xf32>
    %184 = arith.addf %182, %183 : vector<4x512xf32>
    %c0_150 = arith.constant 0 : index
    %c0_151 = arith.constant 0 : index
    %c0_152 = arith.constant 0 : index
    %185 = vector.load %arg11[%c0_150, %c0_151, %c0_152] : memref<1x4x512xf32, #tpu.memory_space<vmem>>, vector<1x4x512xf32>
    %186 = vector.shape_cast %185 : vector<1x4x512xf32> to vector<4x512xf32>
    %187 = vector.shape_cast %184 : vector<4x512xf32> to vector<1x4x512xf32>
    tpu.vector_store %arg11[%c0_150, %c0_151, %c0_152], %187 {strides = array<i32>} : memref<1x4x512xf32, #tpu.memory_space<vmem>>, vector<1x4x512xf32>,
    return
  }
  func.func @transform_0(%arg0: i32) -> (i32, i32, i32) {
    %c0_i32 = arith.constant 0 : i32
    %c0_i32_0 = arith.constant 0 : i32
    %c0_i32_1 = arith.constant 0 : i32
    return %arg0, %c0_i32, %c0_i32_0 : i32, i32, i32
  }
  func.func @transform_1(%arg0: i32) -> (i32, i32, i32) {
    %c0_i32 = arith.constant 0 : i32
    %c0_i32_0 = arith.constant 0 : i32
    %c0_i32_1 = arith.constant 0 : i32
    %c0_i32_2 = arith.constant 0 : i32
    return %c0_i32, %c0_i32_0, %c0_i32_1 : i32, i32, i32
  }
  func.func @transform_2(%arg0: i32) -> (i32, i32) {
    %c0_i32 = arith.constant 0 : i32
    %c0_i32_0 = arith.constant 0 : i32
    %c0_i32_1 = arith.constant 0 : i32
    return %c0_i32, %c0_i32_0 : i32, i32
  }
  func.func @transform_3(%arg0: i32) -> (i32, i32) {
    %c0_i32 = arith.constant 0 : i32
    %c0_i32_0 = arith.constant 0 : i32
    %c0_i32_1 = arith.constant 0 : i32
    return %c0_i32, %c0_i32_0 : i32, i32
  }
  func.func @transform_4(%arg0: i32) -> (i32, i32) {
    %c0_i32 = arith.constant 0 : i32
    %c0_i32_0 = arith.constant 0 : i32
    %c0_i32_1 = arith.constant 0 : i32
    return %c0_i32, %c0_i32_0 : i32, i32
  }
  func.func @transform_5(%arg0: i32) -> (i32, i32) {
    %c0_i32 = arith.constant 0 : i32
    %c0_i32_0 = arith.constant 0 : i32
    %c0_i32_1 = arith.constant 0 : i32
    return %c0_i32, %c0_i32_0 : i32, i32
  }
  func.func @transform_6(%arg0: i32) -> (i32, i32) {
    %c0_i32 = arith.constant 0 : i32
    %c0_i32_0 = arith.constant 0 : i32
    %c0_i32_1 = arith.constant 0 : i32
    return %c0_i32, %c0_i32_0 : i32, i32
  }
  func.func @transform_7(%arg0: i32) -> (i32, i32) {
    %c0_i32 = arith.constant 0 : i32
    %c0_i32_0 = arith.constant 0 : i32
    %c0_i32_1 = arith.constant 0 : i32
    return %c0_i32, %c0_i32_0 : i32, i32
  }
  func.func @transform_8(%arg0: i32) -> (i32, i32) {
    %c0_i32 = arith.constant 0 : i32
    %c0_i32_0 = arith.constant 0 : i32
    %c0_i32_1 = arith.constant 0 : i32
    return %c0_i32, %c0_i32_0 : i32, i32
  }
  func.func @transform_9(%arg0: i32) -> (i32, i32) {
    %c0_i32 = arith.constant 0 : i32
    %c0_i32_0 = arith.constant 0 : i32
    %c0_i32_1 = arith.constant 0 : i32
    return %c0_i32, %c0_i32_0 : i32, i32
  }
  func.func @transform_10(%arg0: i32) -> (i32, i32, i32) {
    %c0_i32 = arith.constant 0 : i32
    %c0_i32_0 = arith.constant 0 : i32
    %c0_i32_1 = arith.constant 0 : i32
    return %arg0, %c0_i32, %c0_i32_0 : i32, i32, i32
  }
}

</mosaic_0001>

<llo_original>
// kernel: tpu_custom_call.1
$region0: #{tpu_custom_call.1}
  #allocation0 [shape = 'u32[]', space=smem, size = 0x4, offset = 0x4, fixed_abs, tag = 'smem constant byte address 0x4 - core index']
  #allocation1 [shape = 'u32[72,128]{1,0:T(1,128)}', space=vmem, size = 0x9000, scoped, tag = 'internal scratch']
  #allocation2 [shape = 'f32[32,512]{1,0:T(8,128)}', space=vmem, size = 0x10000, scoped, tag = 'scratch operand']
  #allocation3 [shape = 'f32[216,512]{1,0:T(8,128)}', space=vmem, size = 0x6c000, scoped, tag = 'scratch operand']
  %s0 = inlined_call_operand.hbm [shape: f32[1,8,512], index: 0, kind: input, shape index: {}]
  %s1 = inlined_call_operand.hbm [shape: f32[9,1,512], index: 1, kind: input, shape index: {}]
  %s2 = inlined_call_operand.vmem [shape: f32[8,72], index: 2, kind: input, shape index: {}]
  %s3 = inlined_call_operand.vmem [shape: f32[8,1], index: 3, kind: input, shape index: {}]
  %s4 = inlined_call_operand.vmem [shape: f32[8,144], index: 4, kind: input, shape index: {}]
  %s5 = inlined_call_operand.vmem [shape: f32[8,1], index: 5, kind: input, shape index: {}]
  %s6 = inlined_call_operand.hbm [shape: f32[8,216], index: 6, kind: input, shape index: {}]
  %s7 = inlined_call_operand.vmem [shape: f32[8,1], index: 7, kind: input, shape index: {}]
  %s8 = inlined_call_operand.vmem [shape: f32[4,32], index: 8, kind: input, shape index: {}]
  %s9 = inlined_call_operand.vmem [shape: f32[4,1], index: 9, kind: input, shape index: {}]
  %s10 = inlined_call_operand.hbm [shape: f32[1,4,512], index: 10, kind: output, shape index: {}]
  %s11 = sld [smem:[#allocation0]]
  $region62: #{tpu_custom_call.1} parent=0
    _
  %s13 = ssub.s32 1, %s11
  %s14 = scalar_select 0, %s13, %s11
  $region1: #{tpu_custom_call.1} parent=0
    #allocation4 [shape = 'u8[16384]{0}', space=vmem, size = 0x4000, scoped, tag = 'input window, operand 0, single buffered']
    #allocation5 [shape = 's32[1]{0}', space=sflag, size = 0x4, scoped, tag = 'scoped memory for tpu_custom_call.1']
    #allocation6 [shape = 's32[1]{0}', space=sflag, size = 0x4, scoped, tag = 'scoped memory for tpu_custom_call.1']
    #allocation7 [shape = 'u8[18432]{0}', space=vmem, size = 0x4800, scoped, tag = 'input window, operand 1, single buffered']
    #allocation8 [shape = 's32[1]{0}', space=sflag, size = 0x4, scoped, tag = 'scoped memory for tpu_custom_call.1']
    #allocation9 [shape = 'u8[8192]{0}', space=vmem, size = 0x2000, scoped, tag = 'input window, operand 6, single buffered']
    #allocation10 [shape = 'u8[8192]{0}', space=vmem, size = 0x2000, scoped, tag = 'output window, operand 0, single buffered']
    %15 = vsyncpa [#allocation5], 0
    %16 = vsyncpa [#allocation8], 0
    %17 = vsyncpa [#allocation6], 0
    // Predicated region
    $region2: #{tpu_custom_call.1} parent=1 // pred_check
      _
    $region3: #{tpu_custom_call.1} parent=1 // pred_check_branch
      %19 = sbr.rel (0) target = $region5
    $region4: #{tpu_custom_call.1} parent=1 // pred_region
      %21 = vsyncadd [#allocation5], 0
      %s23 = sshll.u32 %s0, 4
      %s24 = int_to_ptr.hbm [resolvable:$true] %s23
      %s25 = sshll.u32 [#allocation4], 4
      %s26 = int_to_ptr.vmem [resolvable:$true] %s25
      %28 = dma.hbm_to_vmem [thread:$0]  %s24, 512, %s26, [#allocation5]
    $region5: #{tpu_custom_call.1} parent=1 // pred_fallthru
      _
    // Predicated region
    $region6: #{tpu_custom_call.1} parent=1 // pred_check
      _
    $region7: #{tpu_custom_call.1} parent=1 // pred_check_branch
      %30 = sbr.rel (0) target = $region9
    $region8: #{tpu_custom_call.1} parent=1 // pred_region
      %32 = vsyncadd [#allocation8], 0
      %s33 = sshll.u32 %s1, 4
      %s34 = int_to_ptr.hbm [resolvable:$true] %s33
      %s35 = sshll.u32 [#allocation7], 4
      %s36 = int_to_ptr.vmem [resolvable:$true] %s35
      %41 = dma.hbm_to_vmem [thread:$0]  %s34, 576, %s36, [#allocation8], 64, 64, 4
    $region9: #{tpu_custom_call.1} parent=1 // pred_fallthru
      _
    // Predicated region
    $region10: #{tpu_custom_call.1} parent=1 // pred_check
      _
    $region11: #{tpu_custom_call.1} parent=1 // pred_check_branch
      %43 = sbr.rel (0) target = $region13
    $region12: #{tpu_custom_call.1} parent=1 // pred_region
      _
    $region13: #{tpu_custom_call.1} parent=1 // pred_fallthru
      _
    // Predicated region
    $region14: #{tpu_custom_call.1} parent=1 // pred_check
      _
    $region15: #{tpu_custom_call.1} parent=1 // pred_check_branch
      %45 = sbr.rel (0) target = $region17
    $region16: #{tpu_custom_call.1} parent=1 // pred_region
      _
    $region17: #{tpu_custom_call.1} parent=1 // pred_fallthru
      _
    // Predicated region
    $region18: #{tpu_custom_call.1} parent=1 // pred_check
      _
    $region19: #{tpu_custom_call.1} parent=1 // pred_check_branch
      %47 = sbr.rel (0) target = $region21
    $region20: #{tpu_custom_call.1} parent=1 // pred_region
      _
    $region21: #{tpu_custom_call.1} parent=1 // pred_fallthru
      _
    // Predicated region
    $region22: #{tpu_custom_call.1} parent=1 // pred_check
      _
    $region23: #{tpu_custom_call.1} parent=1 // pred_check_branch
      %49 = sbr.rel (0) target = $region25
    $region24: #{tpu_custom_call.1} parent=1 // pred_region
      _
    $region25: #{tpu_custom_call.1} parent=1 // pred_fallthru
      _
    // Predicated region
    $region26: #{tpu_custom_call.1} parent=1 // pred_check
      _
    $region27: #{tpu_custom_call.1} parent=1 // pred_check_branch
      %51 = sbr.rel (0) target = $region29
    $region28: #{tpu_custom_call.1} parent=1 // pred_region
      %53 = vsyncadd [#allocation8], 0
      %s55 = sshll.u32 %s6, 4
      %s56 = int_to_ptr.hbm [resolvable:$true] %s55
      %s57 = sshll.u32 [#allocation9], 4
      %s58 = int_to_ptr.vmem [resolvable:$true] %s57
      %60 = dma.hbm_to_vmem [thread:$0]  %s56, 256, %s58, [#allocation8]
    $region29: #{tpu_custom_call.1} parent=1 // pred_fallthru
      _
    // Predicated region
    $region30: #{tpu_custom_call.1} parent=1 // pred_check
      _
    $region31: #{tpu_custom_call.1} parent=1 // pred_check_branch
      %62 = sbr.rel (0) target = $region33
    $region32: #{tpu_custom_call.1} parent=1 // pred_region
      _
    $region33: #{tpu_custom_call.1} parent=1 // pred_fallthru
      _
    // Predicated region
    $region34: #{tpu_custom_call.1} parent=1 // pred_check
      _
    $region35: #{tpu_custom_call.1} parent=1 // pred_check_branch
      %64 = sbr.rel (0) target = $region37
    $region36: #{tpu_custom_call.1} parent=1 // pred_region
      _
    $region37: #{tpu_custom_call.1} parent=1 // pred_fallthru
      _
    // Predicated region
    $region38: #{tpu_custom_call.1} parent=1 // pred_check
      _
    $region39: #{tpu_custom_call.1} parent=1 // pred_check_branch
      %66 = sbr.rel (0) target = $region41
    $region40: #{tpu_custom_call.1} parent=1 // pred_region
      _
    $region41: #{tpu_custom_call.1} parent=1 // pred_fallthru
      _
    // Predicated region
    $region42: #{tpu_custom_call.1} parent=1 // pred_check
      _
    $region43: #{tpu_custom_call.1} parent=1 // pred_check_branch
      %68 = sbr.rel (0) target = $region45
    $region44: #{tpu_custom_call.1} parent=1 // pred_region
      %70 = dma.done [#allocation5], 512
    $region45: #{tpu_custom_call.1} parent=1 // pred_fallthru
      _
    // Predicated region
    $region46: #{tpu_custom_call.1} parent=1 // pred_check
      _
    $region47: #{tpu_custom_call.1} parent=1 // pred_check_branch
      %72 = sbr.rel (0) target = $region49
    $region48: #{tpu_custom_call.1} parent=1 // pred_region
      %74 = dma.done [#allocation8], 576
    $region49: #{tpu_custom_call.1} parent=1 // pred_fallthru
      _
    // Predicated region
    $region50: #{tpu_custom_call.1} parent=1 // pred_check
      _
    $region51: #{tpu_custom_call.1} parent=1 // pred_check_branch
      %76 = sbr.rel (0) target = $region53
    $region52: #{tpu_custom_call.1} parent=1 // pred_region
      %78 = dma.done [#allocation8], 256
    $region53: #{tpu_custom_call.1} parent=1 // pred_fallthru
      _
    %v79 = vld [vmem:[#allocation4] sm:$0xff]
    %v80 = vld [vmem:[#allocation4 + $0x8] sm:$0xff]
    %v81 = vld [vmem:[#allocation4 + $0x10] sm:$0xff]
    %v82 = vld [vmem:[#allocation4 + $0x18] sm:$0xff]
    %83 = vst [vmem:[#allocation2] sm:$0xff] %v79
    %84 = vst [vmem:[#allocation2 + $0x8] sm:$0xff] %v80
    %85 = vst [vmem:[#allocation2 + $0x10] sm:$0xff] %v81
    %86 = vst [vmem:[#allocation2 + $0x18] sm:$0xff] %v82
    %87 = vrot.lane.b32.xlu0 %v79, 17
    %v88 = vpop.permute.xlu0 %87
    %89 = vrot.lane.b32.xlu0 %v80, 17
    %v90 = vpop.permute.xlu0 %89
    %91 = vrot.lane.b32.xlu0 %v81, 17
    %v92 = vpop.permute.xlu0 %91
    %93 = vrot.lane.b32.xlu0 %v82, 17
    %v94 = vpop.permute.xlu0 %93
    %v95 = vlaneseq
    %v96 = vand.u32 %v95, 127
    %vm97 = vcmp.lt.s32.totalorder %v96, 17
    %v98 = vsel %vm97, %v92, %v94
    %v99 = vsel %vm97, %v90, %v92
    %v100 = vsel %vm97, %v88, %v90
    %v101 = vsel %vm97, %v94, %v88
    %v102 = vld [vmem:[#allocation7] sm:$0xf]
    %v104 = vperm.slane %v102, 0
    %v105 = vperm.slane %v102, 1
    %v106 = vperm.slane %v102, 2
    %v107 = vperm.slane %v102, 3
    %v112 = vmul.f32 %v101, %v104
    %v113 = vmul.f32 %v100, %v105
    %v114 = vmul.f32 %v99, %v106
    %v115 = vmul.f32 %v98, %v107
    %116 = vst [vmem:[#allocation3] sm:$0xff] %v112
    %117 = vst [vmem:[#allocation3 + $0x8] sm:$0xff] %v113
    %118 = vst [vmem:[#allocation3 + $0x10] sm:$0xff] %v114
    %119 = vst [vmem:[#allocation3 + $0x18] sm:$0xff] %v115
    %120 = vrot.lane.b32.xlu0 %v79, 16
    %v121 = vpop.permute.xlu0 %120
    %122 = vrot.lane.b32.xlu0 %v80, 16
    %v123 = vpop.permute.xlu0 %122
    %124 = vrot.lane.b32.xlu0 %v81, 16
    %v125 = vpop.permute.xlu0 %124
    %126 = vrot.lane.b32.xlu0 %v82, 16
    %v127 = vpop.permute.xlu0 %126
    %vm128 = vcmp.lt.s32.totalorder %v96, 16
    %v129 = vsel %vm128, %v125, %v127
    %v130 = vsel %vm128, %v123, %v125
    %v131 = vsel %vm128, %v121, %v123
    %v132 = vsel %vm128, %v127, %v121
    %s133 = scalar_lea.vmem [#allocation7], 4
    %v134 = vld [vmem:[%s133] sm:$0xf]
    %v136 = vperm.slane %v134, 0
    %v137 = vperm.slane %v134, 1
    %v138 = vperm.slane %v134, 2
    %v139 = vperm.slane %v134, 3
    %v144 = vmul.f32 %v132, %v136
    %v145 = vmul.f32 %v131, %v137
    %v146 = vmul.f32 %v130, %v138
    %v147 = vmul.f32 %v129, %v139
    %148 = vst [vmem:[#allocation3 + $0x20] sm:$0xff] %v144
    %149 = vst [vmem:[#allocation3 + $0x28] sm:$0xff] %v145
    %150 = vst [vmem:[#allocation3 + $0x30] sm:$0xff] %v146
    %151 = vst [vmem:[#allocation3 + $0x38] sm:$0xff] %v147
    %152 = vrot.lane.b32.xlu0 %v79, 15
    %v153 = vpop.permute.xlu0 %152
    %154 = vrot.lane.b32.xlu0 %v80, 15
    %v155 = vpop.permute.xlu0 %154
    %156 = vrot.lane.b32.xlu0 %v81, 15
    %v157 = vpop.permute.xlu0 %156
    %158 = vrot.lane.b32.xlu0 %v82, 15
    %v159 = vpop.permute.xlu0 %158
    %vm160 = vcmp.lt.s32.totalorder %v96, 15
    %v161 = vsel %vm160, %v157, %v159
    %v162 = vsel %vm160, %v155, %v157
    %v163 = vsel %vm160, %v153, %v155
    %v164 = vsel %vm160, %v159, %v153
    %s165 = scalar_lea.vmem [#allocation7], 8
    %v166 = vld [vmem:[%s165] sm:$0xf]
    %v168 = vperm.slane %v166, 0
    %v169 = vperm.slane %v166, 1
    %v170 = vperm.slane %v166, 2
    %v171 = vperm.slane %v166, 3
    %v176 = vmul.f32 %v164, %v168
    %v177 = vmul.f32 %v163, %v169
    %v178 = vmul.f32 %v162, %v170
    %v179 = vmul.f32 %v161, %v171
    %180 = vst [vmem:[#allocation3 + $0x40] sm:$0xff] %v176
    %181 = vst [vmem:[#allocation3 + $0x48] sm:$0xff] %v177
    %182 = vst [vmem:[#allocation3 + $0x50] sm:$0xff] %v178
    %183 = vst [vmem:[#allocation3 + $0x58] sm:$0xff] %v179
    %184 = vrot.lane.b32.xlu0 %v79, 1
    %v185 = vpop.permute.xlu0 %184
    %186 = vrot.lane.b32.xlu0 %v80, 1
    %v187 = vpop.permute.xlu0 %186
    %188 = vrot.lane.b32.xlu0 %v81, 1
    %v189 = vpop.permute.xlu0 %188
    %190 = vrot.lane.b32.xlu0 %v82, 1
    %v191 = vpop.permute.xlu0 %190
    %vm192 = vcmp.lt.s32.totalorder %v96, 1
    %v193 = vsel %vm192, %v189, %v191
    %v194 = vsel %vm192, %v187, %v189
    %v195 = vsel %vm192, %v185, %v187
    %v196 = vsel %vm192, %v191, %v185
    %s197 = scalar_lea.vmem [#allocation7], 12
    %v198 = vld [vmem:[%s197] sm:$0xf]
    %v200 = vperm.slane %v198, 0
    %v201 = vperm.slane %v198, 1
    %v202 = vperm.slane %v198, 2
    %v203 = vperm.slane %v198, 3
    %v208 = vmul.f32 %v196, %v200
    %v209 = vmul.f32 %v195, %v201
    %v210 = vmul.f32 %v194, %v202
    %v211 = vmul.f32 %v193, %v203
    %212 = vst [vmem:[#allocation3 + $0x60] sm:$0xff] %v208
    %213 = vst [vmem:[#allocation3 + $0x68] sm:$0xff] %v209
    %214 = vst [vmem:[#allocation3 + $0x70] sm:$0xff] %v210
    %215 = vst [vmem:[#allocation3 + $0x78] sm:$0xff] %v211
    %216 = vst [vmem:[#allocation3 + $0x80] sm:$0xff] %v79
    %217 = vst [vmem:[#allocation3 + $0x88] sm:$0xff] %v80
    %218 = vst [vmem:[#allocation3 + $0x90] sm:$0xff] %v81
    %219 = vst [vmem:[#allocation3 + $0x98] sm:$0xff] %v82
    %220 = vrot.lane.b32.xlu0 %v79, 127
    %v221 = vpop.permute.xlu0 %220
    %222 = vrot.lane.b32.xlu0 %v80, 127
    %v223 = vpop.permute.xlu0 %222
    %224 = vrot.lane.b32.xlu0 %v81, 127
    %v225 = vpop.permute.xlu0 %224
    %226 = vrot.lane.b32.xlu0 %v82, 127
    %v227 = vpop.permute.xlu0 %226
    %vm228 = vcmp.lt.s32.totalorder %v96, 127
    %v229 = vsel %vm228, %v225, %v227
    %v230 = vsel %vm228, %v223, %v225
    %v231 = vsel %vm228, %v221, %v223
    %v232 = vsel %vm228, %v227, %v221
    %s233 = scalar_lea.vmem [#allocation7], 20
    %v234 = vld [vmem:[%s233] sm:$0xf]
    %v236 = vperm.slane %v234, 0
    %v237 = vperm.slane %v234, 1
    %v238 = vperm.slane %v234, 2
    %v239 = vperm.slane %v234, 3
    %v244 = vmul.f32 %v231, %v236
    %v245 = vmul.f32 %v230, %v237
    %v246 = vmul.f32 %v229, %v238
    %v247 = vmul.f32 %v232, %v239
    %248 = vst [vmem:[#allocation3 + $0xa0] sm:$0xff] %v244
    %249 = vst [vmem:[#allocation3 + $0xa8] sm:$0xff] %v245
    %250 = vst [vmem:[#allocation3 + $0xb0] sm:$0xff] %v246
    %251 = vst [vmem:[#allocation3 + $0xb8] sm:$0xff] %v247
    %252 = vrot.lane.b32.xlu0 %v79, 113
    %v253 = vpop.permute.xlu0 %252
    %254 = vrot.lane.b32.xlu0 %v80, 113
    %v255 = vpop.permute.xlu0 %254
    %256 = vrot.lane.b32.xlu0 %v81, 113
    %v257 = vpop.permute.xlu0 %256
    %258 = vrot.lane.b32.xlu0 %v82, 113
    %v259 = vpop.permute.xlu0 %258
    %vm260 = vcmp.lt.s32.totalorder %v96, 113
    %v261 = vsel %vm260, %v257, %v259
    %v262 = vsel %vm260, %v255, %v257
    %v263 = vsel %vm260, %v253, %v255
    %v264 = vsel %vm260, %v259, %v253
    %s265 = scalar_lea.vmem [#allocation7], 24
    %v266 = vld [vmem:[%s265] sm:$0xf]
    %v268 = vperm.slane %v266, 0
    %v269 = vperm.slane %v266, 1
    %v270 = vperm.slane %v266, 2
    %v271 = vperm.slane %v266, 3
    %v276 = vmul.f32 %v263, %v268
    %v277 = vmul.f32 %v262, %v269
    %v278 = vmul.f32 %v261, %v270
    %v279 = vmul.f32 %v264, %v271
    %280 = vst [vmem:[#allocation3 + $0xc0] sm:$0xff] %v276
    %281 = vst [vmem:[#allocation3 + $0xc8] sm:$0xff] %v277
    %282 = vst [vmem:[#allocation3 + $0xd0] sm:$0xff] %v278
    %283 = vst [vmem:[#allocation3 + $0xd8] sm:$0xff] %v279
    %284 = vrot.lane.b32.xlu0 %v79, 112
    %v285 = vpop.permute.xlu0 %284
    %286 = vrot.lane.b32.xlu0 %v80, 112
    %v287 = vpop.permute.xlu0 %286
    %288 = vrot.lane.b32.xlu0 %v81, 112
    %v289 = vpop.permute.xlu0 %288
    %290 = vrot.lane.b32.xlu0 %v82, 112
    %v291 = vpop.permute.xlu0 %290
    %vm292 = vcmp.lt.s32.totalorder %v96, 112
    %v293 = vsel %vm292, %v289, %v291
    %v294 = vsel %vm292, %v287, %v289
    %v295 = vsel %vm292, %v285, %v287
    %v296 = vsel %vm292, %v291, %v285
    %s297 = scalar_lea.vmem [#allocation7], 28
    %v298 = vld [vmem:[%s297] sm:$0xf]
    %v300 = vperm.slane %v298, 0
    %v301 = vperm.slane %v298, 1
    %v302 = vperm.slane %v298, 2
    %v303 = vperm.slane %v298, 3
    %v308 = vmul.f32 %v295, %v300
    %v309 = vmul.f32 %v294, %v301
    %v310 = vmul.f32 %v293, %v302
    %v311 = vmul.f32 %v296, %v303
    %312 = vst [vmem:[#allocation3 + $0xe0] sm:$0xff] %v308
    %313 = vst [vmem:[#allocation3 + $0xe8] sm:$0xff] %v309
    %314 = vst [vmem:[#allocation3 + $0xf0] sm:$0xff] %v310
    %315 = vst [vmem:[#allocation3 + $0xf8] sm:$0xff] %v311
    %316 = vrot.lane.b32.xlu0 %v79, 111
    %v317 = vpop.permute.xlu0 %316
    %318 = vrot.lane.b32.xlu0 %v80, 111
    %v319 = vpop.permute.xlu0 %318
    %320 = vrot.lane.b32.xlu0 %v81, 111
    %v321 = vpop.permute.xlu0 %320
    %322 = vrot.lane.b32.xlu0 %v82, 111
    %v323 = vpop.permute.xlu0 %322
    %vm324 = vcmp.lt.s32.totalorder %v96, 111
    %v325 = vsel %vm324, %v321, %v323
    %v326 = vsel %vm324, %v319, %v321
    %v327 = vsel %vm324, %v317, %v319
    %v328 = vsel %vm324, %v323, %v317
    %s329 = scalar_lea.vmem [#allocation7], 32
    %v330 = vld [vmem:[%s329] sm:$0xf]
    %v332 = vperm.slane %v330, 0
    %v333 = vperm.slane %v330, 1
    %v334 = vperm.slane %v330, 2
    %v335 = vperm.slane %v330, 3
    %v340 = vmul.f32 %v327, %v332
    %v341 = vmul.f32 %v326, %v333
    %v342 = vmul.f32 %v325, %v334
    %v343 = vmul.f32 %v328, %v335
    %344 = vst [vmem:[#allocation3 + $0x100] sm:$0xff] %v340
    %345 = vst [vmem:[#allocation3 + $0x108] sm:$0xff] %v341
    %346 = vst [vmem:[#allocation3 + $0x110] sm:$0xff] %v342
    %347 = vst [vmem:[#allocation3 + $0x118] sm:$0xff] %v343
    %v348 = vld [vmem:[%s2] sm:$0xff]
    %v349 = vld [vmem:[#allocation3] sm:$0xff]
    %v350 = vld [vmem:[#allocation3 + $0x8] sm:$0xff]
    %v351 = vld [vmem:[#allocation3 + $0x10] sm:$0xff]
    %v352 = vld [vmem:[#allocation3 + $0x18] sm:$0xff]
    %v353 = vld [vmem:[#allocation3 + $0x20] sm:$0xff]
    %v354 = vld [vmem:[#allocation3 + $0x28] sm:$0xff]
    %v355 = vld [vmem:[#allocation3 + $0x30] sm:$0xff]
    %v356 = vld [vmem:[#allocation3 + $0x38] sm:$0xff]
    %v357 = vld [vmem:[#allocation3 + $0x40] sm:$0xff]
    %v358 = vld [vmem:[#allocation3 + $0x48] sm:$0xff]
    %v359 = vld [vmem:[#allocation3 + $0x50] sm:$0xff]
    %v360 = vld [vmem:[#allocation3 + $0x58] sm:$0xff]
    %v361 = vld [vmem:[#allocation3 + $0x60] sm:$0xff]
    %v362 = vld [vmem:[#allocation3 + $0x68] sm:$0xff]
    %v363 = vld [vmem:[#allocation3 + $0x70] sm:$0xff]
    %v364 = vld [vmem:[#allocation3 + $0x78] sm:$0xff]
    %v365 = vld [vmem:[#allocation3 + $0x80] sm:$0xff]
    %v366 = vld [vmem:[#allocation3 + $0x88] sm:$0xff]
    %v367 = vld [vmem:[#allocation3 + $0x90] sm:$0xff]
    %v368 = vld [vmem:[#allocation3 + $0x98] sm:$0xff]
    %v369 = vld [vmem:[#allocation3 + $0xa0] sm:$0xff]
    %v370 = vld [vmem:[#allocation3 + $0xa8] sm:$0xff]
    %v371 = vld [vmem:[#allocation3 + $0xb0] sm:$0xff]
    %v372 = vld [vmem:[#allocation3 + $0xb8] sm:$0xff]
    %v373 = vld [vmem:[#allocation3 + $0xc0] sm:$0xff]
    %v374 = vld [vmem:[#allocation3 + $0xc8] sm:$0xff]
    %v375 = vld [vmem:[#allocation3 + $0xd0] sm:$0xff]
    %v376 = vld [vmem:[#allocation3 + $0xd8] sm:$0xff]
    %v377 = vld [vmem:[#allocation3 + $0xe0] sm:$0xff]
    %v378 = vld [vmem:[#allocation3 + $0xe8] sm:$0xff]
    %v379 = vld [vmem:[#allocation3 + $0xf0] sm:$0xff]
    %v380 = vld [vmem:[#allocation3 + $0xf8] sm:$0xff]
    %v381 = vld [vmem:[#allocation3 + $0x100] sm:$0xff]
    %v382 = vld [vmem:[#allocation3 + $0x108] sm:$0xff]
    %v383 = vld [vmem:[#allocation3 + $0x110] sm:$0xff]
    %v384 = vld [vmem:[#allocation3 + $0x118] sm:$0xff]
    %v385 = vld [vmem:[%s3] sm:$0xff]
    %387 = vset.pattern.permute.xlu0 0
    %388 = vperm.xlu0 %387, %v385
    %v389 = vpop.permute.xlu0 %388
    %vm391 = vcmask 588800
    %v393 = vsel %vm391, %v348, 0
    %395 = vmatpush.msra.mxu0 0.0
    %396 = vmatpush.msra.mxu0 0.0
    %397 = vmatpush.msra.mxu0 0.0
    %398 = vmatpush.msra.mxu0 0.0
    %399 = vmatpush.msra.mxu0 0.0
    %400 = vmatpush.msra.mxu0 0.0
    %401 = vmatpush.msra.mxu0 0.0
    %402 = vmatpush.msra.mxu0 %v381
    %403 = vmatpush.msra.mxu0 %v377
    %404 = vmatpush.msra.mxu0 %v373
    %405 = vmatpush.msra.mxu0 %v369
    %406 = vmatpush.msra.mxu0 %v365
    %407 = vmatpush.msra.mxu0 %v361
    %408 = vmatpush.msra.mxu0 %v357
    %409 = vmatpush.msra.mxu0 %v353
    %410 = vmatpush.msra.mxu0 %v349
    %411 = vmatmul.f32.gmra.mxu0 %v393
    %v412 = vpop.f32.mrf.mxu0
    %v413 = vadd.f32 %v389, %v412
    %414 = vdwg.mxu0
    %415 = vmatpush.msra.mxu0 0.0
    %416 = vmatpush.msra.mxu0 0.0
    %417 = vmatpush.msra.mxu0 0.0
    %418 = vmatpush.msra.mxu0 0.0
    %419 = vmatpush.msra.mxu0 0.0
    %420 = vmatpush.msra.mxu0 0.0
    %421 = vmatpush.msra.mxu0 0.0
    %422 = vmatpush.msra.mxu0 %v382
    %423 = vmatpush.msra.mxu0 %v378
    %424 = vmatpush.msra.mxu0 %v374
    %425 = vmatpush.msra.mxu0 %v370
    %426 = vmatpush.msra.mxu0 %v366
    %427 = vmatpush.msra.mxu0 %v362
    %428 = vmatpush.msra.mxu0 %v358
    %429 = vmatpush.msra.mxu0 %v354
    %430 = vmatpush.msra.mxu0 %v350
    %431 = vmatmul.f32.gmra.mxu0 %v393
    %v432 = vpop.f32.mrf.mxu0
    %v433 = vadd.f32 %v389, %v432
    %434 = vdwg.mxu0
    %435 = vmatpush.msra.mxu0 0.0
    %436 = vmatpush.msra.mxu0 0.0
    %437 = vmatpush.msra.mxu0 0.0
    %438 = vmatpush.msra.mxu0 0.0
    %439 = vmatpush.msra.mxu0 0.0
    %440 = vmatpush.msra.mxu0 0.0
    %441 = vmatpush.msra.mxu0 0.0
    %442 = vmatpush.msra.mxu0 %v383
    %443 = vmatpush.msra.mxu0 %v379
    %444 = vmatpush.msra.mxu0 %v375
    %445 = vmatpush.msra.mxu0 %v371
    %446 = vmatpush.msra.mxu0 %v367
    %447 = vmatpush.msra.mxu0 %v363
    %448 = vmatpush.msra.mxu0 %v359
    %449 = vmatpush.msra.mxu0 %v355
    %450 = vmatpush.msra.mxu0 %v351
    %451 = vmatmul.f32.gmra.mxu0 %v393
    %v452 = vpop.f32.mrf.mxu0
    %v453 = vadd.f32 %v389, %v452
    %454 = vdwg.mxu0
    %455 = vmatpush.msra.mxu0 0.0
    %456 = vmatpush.msra.mxu0 0.0
    %457 = vmatpush.msra.mxu0 0.0
    %458 = vmatpush.msra.mxu0 0.0
    %459 = vmatpush.msra.mxu0 0.0
    %460 = vmatpush.msra.mxu0 0.0
    %461 = vmatpush.msra.mxu0 0.0
    %462 = vmatpush.msra.mxu0 %v384
    %463 = vmatpush.msra.mxu0 %v380
    %464 = vmatpush.msra.mxu0 %v376
    %465 = vmatpush.msra.mxu0 %v372
    %466 = vmatpush.msra.mxu0 %v368
    %467 = vmatpush.msra.mxu0 %v364
    %468 = vmatpush.msra.mxu0 %v360
    %469 = vmatpush.msra.mxu0 %v356
    %470 = vmatpush.msra.mxu0 %v352
    %471 = vmatmul.f32.gmra.mxu0 %v393
    %v472 = vpop.f32.mrf.mxu0
    %v473 = vadd.f32 %v389, %v472
    %474 = vdwg.mxu0
    %v475 = vmax.f32 %v413, 0.0
    %v476 = vmax.f32 %v433, 0.0
    %v477 = vmax.f32 %v453, 0.0
    %v478 = vmax.f32 %v473, 0.0
    %479 = vst [vmem:[#allocation2 + $0x20] sm:$0xff] %v475
    %480 = vst [vmem:[#allocation2 + $0x28] sm:$0xff] %v476
    %481 = vst [vmem:[#allocation2 + $0x30] sm:$0xff] %v477
    %482 = vst [vmem:[#allocation2 + $0x38] sm:$0xff] %v478
    %483 = vrot.lane.b32.xlu0 %v475, 17
    %v484 = vpop.permute.xlu0 %483
    %485 = vrot.lane.b32.xlu0 %v476, 17
    %v486 = vpop.permute.xlu0 %485
    %487 = vrot.lane.b32.xlu0 %v477, 17
    %v488 = vpop.permute.xlu0 %487
    %489 = vrot.lane.b32.xlu0 %v478, 17
    %v490 = vpop.permute.xlu0 %489
    %v491 = vsel %vm97, %v488, %v490
    %v492 = vsel %vm97, %v486, %v488
    %v493 = vsel %vm97, %v484, %v486
    %v494 = vsel %vm97, %v490, %v484
    %v495 = vld [vmem:[#allocation7] sm:$0xf]
    %v497 = vperm.slane %v495, 0
    %v498 = vperm.slane %v495, 1
    %v499 = vperm.slane %v495, 2
    %v500 = vperm.slane %v495, 3
    %v505 = vmul.f32 %v494, %v497
    %v506 = vmul.f32 %v493, %v498
    %v507 = vmul.f32 %v492, %v499
    %v508 = vmul.f32 %v491, %v500
    %509 = vst [vmem:[#allocation3 + $0x120] sm:$0xff] %v505
    %510 = vst [vmem:[#allocation3 + $0x128] sm:$0xff] %v506
    %511 = vst [vmem:[#allocation3 + $0x130] sm:$0xff] %v507
    %512 = vst [vmem:[#allocation3 + $0x138] sm:$0xff] %v508
    %513 = vrot.lane.b32.xlu0 %v475, 16
    %v514 = vpop.permute.xlu0 %513
    %515 = vrot.lane.b32.xlu0 %v476, 16
    %v516 = vpop.permute.xlu0 %515
    %517 = vrot.lane.b32.xlu0 %v477, 16
    %v518 = vpop.permute.xlu0 %517
    %519 = vrot.lane.b32.xlu0 %v478, 16
    %v520 = vpop.permute.xlu0 %519
    %v521 = vsel %vm128, %v518, %v520
    %v522 = vsel %vm128, %v516, %v518
    %v523 = vsel %vm128, %v514, %v516
    %v524 = vsel %vm128, %v520, %v514
    %v525 = vld [vmem:[%s133] sm:$0xf]
    %v527 = vperm.slane %v525, 0
    %v528 = vperm.slane %v525, 1
    %v529 = vperm.slane %v525, 2
    %v530 = vperm.slane %v525, 3
    %v535 = vmul.f32 %v524, %v527
    %v536 = vmul.f32 %v523, %v528
    %v537 = vmul.f32 %v522, %v529
    %v538 = vmul.f32 %v521, %v530
    %539 = vst [vmem:[#allocation3 + $0x140] sm:$0xff] %v535
    %540 = vst [vmem:[#allocation3 + $0x148] sm:$0xff] %v536
    %541 = vst [vmem:[#allocation3 + $0x150] sm:$0xff] %v537
    %542 = vst [vmem:[#allocation3 + $0x158] sm:$0xff] %v538
    %543 = vrot.lane.b32.xlu0 %v475, 15
    %v544 = vpop.permute.xlu0 %543
    %545 = vrot.lane.b32.xlu0 %v476, 15
    %v546 = vpop.permute.xlu0 %545
    %547 = vrot.lane.b32.xlu0 %v477, 15
    %v548 = vpop.permute.xlu0 %547
    %549 = vrot.lane.b32.xlu0 %v478, 15
    %v550 = vpop.permute.xlu0 %549
    %v551 = vsel %vm160, %v548, %v550
    %v552 = vsel %vm160, %v546, %v548
    %v553 = vsel %vm160, %v544, %v546
    %v554 = vsel %vm160, %v550, %v544
    %v555 = vld [vmem:[%s165] sm:$0xf]
    %v557 = vperm.slane %v555, 0
    %v558 = vperm.slane %v555, 1
    %v559 = vperm.slane %v555, 2
    %v560 = vperm.slane %v555, 3
    %v565 = vmul.f32 %v554, %v557
    %v566 = vmul.f32 %v553, %v558
    %v567 = vmul.f32 %v552, %v559
    %v568 = vmul.f32 %v551, %v560
    %569 = vst [vmem:[#allocation3 + $0x160] sm:$0xff] %v565
    %570 = vst [vmem:[#allocation3 + $0x168] sm:$0xff] %v566
    %571 = vst [vmem:[#allocation3 + $0x170] sm:$0xff] %v567
    %572 = vst [vmem:[#allocation3 + $0x178] sm:$0xff] %v568
    %573 = vrot.lane.b32.xlu0 %v475, 1
    %v574 = vpop.permute.xlu0 %573
    %575 = vrot.lane.b32.xlu0 %v476, 1
    %v576 = vpop.permute.xlu0 %575
    %577 = vrot.lane.b32.xlu0 %v477, 1
    %v578 = vpop.permute.xlu0 %577
    %579 = vrot.lane.b32.xlu0 %v478, 1
    %v580 = vpop.permute.xlu0 %579
    %v581 = vsel %vm192, %v578, %v580
    %v582 = vsel %vm192, %v576, %v578
    %v583 = vsel %vm192, %v574, %v576
    %v584 = vsel %vm192, %v580, %v574
    %v585 = vld [vmem:[%s197] sm:$0xf]
    %v587 = vperm.slane %v585, 0
    %v588 = vperm.slane %v585, 1
    %v589 = vperm.slane %v585, 2
    %v590 = vperm.slane %v585, 3
    %v595 = vmul.f32 %v584, %v587
    %v596 = vmul.f32 %v583, %v588
    %v597 = vmul.f32 %v582, %v589
    %v598 = vmul.f32 %v581, %v590
    %599 = vst [vmem:[#allocation3 + $0x180] sm:$0xff] %v595
    %600 = vst [vmem:[#allocation3 + $0x188] sm:$0xff] %v596
    %601 = vst [vmem:[#allocation3 + $0x190] sm:$0xff] %v597
    %602 = vst [vmem:[#allocation3 + $0x198] sm:$0xff] %v598
    %603 = vst [vmem:[#allocation3 + $0x1a0] sm:$0xff] %v475
    %604 = vst [vmem:[#allocation3 + $0x1a8] sm:$0xff] %v476
    %605 = vst [vmem:[#allocation3 + $0x1b0] sm:$0xff] %v477
    %606 = vst [vmem:[#allocation3 + $0x1b8] sm:$0xff] %v478
    %607 = vrot.lane.b32.xlu0 %v475, 127
    %v608 = vpop.permute.xlu0 %607
    %609 = vrot.lane.b32.xlu0 %v476, 127
    %v610 = vpop.permute.xlu0 %609
    %611 = vrot.lane.b32.xlu0 %v477, 127
    %v612 = vpop.permute.xlu0 %611
    %613 = vrot.lane.b32.xlu0 %v478, 127
    %v614 = vpop.permute.xlu0 %613
    %v615 = vsel %vm228, %v612, %v614
    %v616 = vsel %vm228, %v610, %v612
    %v617 = vsel %vm228, %v608, %v610
    %v618 = vsel %vm228, %v614, %v608
    %v619 = vld [vmem:[%s233] sm:$0xf]
    %v621 = vperm.slane %v619, 0
    %v622 = vperm.slane %v619, 1
    %v623 = vperm.slane %v619, 2
    %v624 = vperm.slane %v619, 3
    %v629 = vmul.f32 %v617, %v621
    %v630 = vmul.f32 %v616, %v622
    %v631 = vmul.f32 %v615, %v623
    %v632 = vmul.f32 %v618, %v624
    %633 = vst [vmem:[#allocation3 + $0x1c0] sm:$0xff] %v629
    %634 = vst [vmem:[#allocation3 + $0x1c8] sm:$0xff] %v630
    %635 = vst [vmem:[#allocation3 + $0x1d0] sm:$0xff] %v631
    %636 = vst [vmem:[#allocation3 + $0x1d8] sm:$0xff] %v632
    %637 = vrot.lane.b32.xlu0 %v475, 113
    %v638 = vpop.permute.xlu0 %637
    %639 = vrot.lane.b32.xlu0 %v476, 113
    %v640 = vpop.permute.xlu0 %639
    %641 = vrot.lane.b32.xlu0 %v477, 113
    %v642 = vpop.permute.xlu0 %641
    %643 = vrot.lane.b32.xlu0 %v478, 113
    %v644 = vpop.permute.xlu0 %643
    %v645 = vsel %vm260, %v642, %v644
    %v646 = vsel %vm260, %v640, %v642
    %v647 = vsel %vm260, %v638, %v640
    %v648 = vsel %vm260, %v644, %v638
    %v649 = vld [vmem:[%s265] sm:$0xf]
    %v651 = vperm.slane %v649, 0
    %v652 = vperm.slane %v649, 1
    %v653 = vperm.slane %v649, 2
    %v654 = vperm.slane %v649, 3
    %v659 = vmul.f32 %v647, %v651
    %v660 = vmul.f32 %v646, %v652
    %v661 = vmul.f32 %v645, %v653
    %v662 = vmul.f32 %v648, %v654
    %663 = vst [vmem:[#allocation3 + $0x1e0] sm:$0xff] %v659
    %664 = vst [vmem:[#allocation3 + $0x1e8] sm:$0xff] %v660
    %665 = vst [vmem:[#allocation3 + $0x1f0] sm:$0xff] %v661
    %666 = vst [vmem:[#allocation3 + $0x1f8] sm:$0xff] %v662
    %667 = vrot.lane.b32.xlu0 %v475, 112
    %v668 = vpop.permute.xlu0 %667
    %669 = vrot.lane.b32.xlu0 %v476, 112
    %v670 = vpop.permute.xlu0 %669
    %671 = vrot.lane.b32.xlu0 %v477, 112
    %v672 = vpop.permute.xlu0 %671
    %673 = vrot.lane.b32.xlu0 %v478, 112
    %v674 = vpop.permute.xlu0 %673
    %v675 = vsel %vm292, %v672, %v674
    %v676 = vsel %vm292, %v670, %v672
    %v677 = vsel %vm292, %v668, %v670
    %v678 = vsel %vm292, %v674, %v668
    %v679 = vld [vmem:[%s297] sm:$0xf]
    %v681 = vperm.slane %v679, 0
    %v682 = vperm.slane %v679, 1
    %v683 = vperm.slane %v679, 2
    %v684 = vperm.slane %v679, 3
    %v689 = vmul.f32 %v677, %v681
    %v690 = vmul.f32 %v676, %v682
    %v691 = vmul.f32 %v675, %v683
    %v692 = vmul.f32 %v678, %v684
    %693 = vst [vmem:[#allocation3 + $0x200] sm:$0xff] %v689
    %694 = vst [vmem:[#allocation3 + $0x208] sm:$0xff] %v690
    %695 = vst [vmem:[#allocation3 + $0x210] sm:$0xff] %v691
    %696 = vst [vmem:[#allocation3 + $0x218] sm:$0xff] %v692
    %697 = vrot.lane.b32.xlu0 %v475, 111
    %v698 = vpop.permute.xlu0 %697
    %699 = vrot.lane.b32.xlu0 %v476, 111
    %v700 = vpop.permute.xlu0 %699
    %701 = vrot.lane.b32.xlu0 %v477, 111
    %v702 = vpop.permute.xlu0 %701
    %703 = vrot.lane.b32.xlu0 %v478, 111
    %v704 = vpop.permute.xlu0 %703
    %v705 = vsel %vm324, %v702, %v704
    %v706 = vsel %vm324, %v700, %v702
    %v707 = vsel %vm324, %v698, %v700
    %v708 = vsel %vm324, %v704, %v698
    %v709 = vld [vmem:[%s329] sm:$0xf]
    %v711 = vperm.slane %v709, 0
    %v712 = vperm.slane %v709, 1
    %v713 = vperm.slane %v709, 2
    %v714 = vperm.slane %v709, 3
    %v719 = vmul.f32 %v707, %v711
    %v720 = vmul.f32 %v706, %v712
    %v721 = vmul.f32 %v705, %v713
    %v722 = vmul.f32 %v708, %v714
    %723 = vst [vmem:[#allocation3 + $0x220] sm:$0xff] %v719
    %724 = vst [vmem:[#allocation3 + $0x228] sm:$0xff] %v720
    %725 = vst [vmem:[#allocation3 + $0x230] sm:$0xff] %v721
    %726 = vst [vmem:[#allocation3 + $0x238] sm:$0xff] %v722
    %v727 = vld [vmem:[%s4] sm:$0xff]
    %v728 = vld [vmem:[%s4 + $0x8] sm:$0xff]
    %v729 = vld [vmem:[#allocation3] sm:$0xff]
    %v730 = vld [vmem:[#allocation3 + $0x8] sm:$0xff]
    %v731 = vld [vmem:[#allocation3 + $0x10] sm:$0xff]
    %v732 = vld [vmem:[#allocation3 + $0x18] sm:$0xff]
    %v733 = vld [vmem:[#allocation3 + $0x20] sm:$0xff]
    %v734 = vld [vmem:[#allocation3 + $0x28] sm:$0xff]
    %v735 = vld [vmem:[#allocation3 + $0x30] sm:$0xff]
    %v736 = vld [vmem:[#allocation3 + $0x38] sm:$0xff]
    %v737 = vld [vmem:[#allocation3 + $0x40] sm:$0xff]
    %v738 = vld [vmem:[#allocation3 + $0x48] sm:$0xff]
    %v739 = vld [vmem:[#allocation3 + $0x50] sm:$0xff]
    %v740 = vld [vmem:[#allocation3 + $0x58] sm:$0xff]
    %v741 = vld [vmem:[#allocation3 + $0x60] sm:$0xff]
    %v742 = vld [vmem:[#allocation3 + $0x68] sm:$0xff]
    %v743 = vld [vmem:[#allocation3 + $0x70] sm:$0xff]
    %v744 = vld [vmem:[#allocation3 + $0x78] sm:$0xff]
    %v745 = vld [vmem:[#allocation3 + $0x80] sm:$0xff]
    %v746 = vld [vmem:[#allocation3 + $0x88] sm:$0xff]
    %v747 = vld [vmem:[#allocation3 + $0x90] sm:$0xff]
    %v748 = vld [vmem:[#allocation3 + $0x98] sm:$0xff]
    %v749 = vld [vmem:[#allocation3 + $0xa0] sm:$0xff]
    %v750 = vld [vmem:[#allocation3 + $0xa8] sm:$0xff]
    %v751 = vld [vmem:[#allocation3 + $0xb0] sm:$0xff]
    %v752 = vld [vmem:[#allocation3 + $0xb8] sm:$0xff]
    %v753 = vld [vmem:[#allocation3 + $0xc0] sm:$0xff]
    %v754 = vld [vmem:[#allocation3 + $0xc8] sm:$0xff]
    %v755 = vld [vmem:[#allocation3 + $0xd0] sm:$0xff]
    %v756 = vld [vmem:[#allocation3 + $0xd8] sm:$0xff]
    %v757 = vld [vmem:[#allocation3 + $0xe0] sm:$0xff]
    %v758 = vld [vmem:[#allocation3 + $0xe8] sm:$0xff]
    %v759 = vld [vmem:[#allocation3 + $0xf0] sm:$0xff]
    %v760 = vld [vmem:[#allocation3 + $0xf8] sm:$0xff]
    %v761 = vld [vmem:[#allocation3 + $0x100] sm:$0xff]
    %v762 = vld [vmem:[#allocation3 + $0x108] sm:$0xff]
    %v763 = vld [vmem:[#allocation3 + $0x110] sm:$0xff]
    %v764 = vld [vmem:[#allocation3 + $0x118] sm:$0xff]
    %v765 = vld [vmem:[#allocation3 + $0x120] sm:$0xff]
    %v766 = vld [vmem:[#allocation3 + $0x128] sm:$0xff]
    %v767 = vld [vmem:[#allocation3 + $0x130] sm:$0xff]
    %v768 = vld [vmem:[#allocation3 + $0x138] sm:$0xff]
    %v769 = vld [vmem:[#allocation3 + $0x140] sm:$0xff]
    %v770 = vld [vmem:[#allocation3 + $0x148] sm:$0xff]
    %v771 = vld [vmem:[#allocation3 + $0x150] sm:$0xff]
    %v772 = vld [vmem:[#allocation3 + $0x158] sm:$0xff]
    %v773 = vld [vmem:[#allocation3 + $0x160] sm:$0xff]
    %v774 = vld [vmem:[#allocation3 + $0x168] sm:$0xff]
    %v775 = vld [vmem:[#allocation3 + $0x170] sm:$0xff]
    %v776 = vld [vmem:[#allocation3 + $0x178] sm:$0xff]
    %v777 = vld [vmem:[#allocation3 + $0x180] sm:$0xff]
    %v778 = vld [vmem:[#allocation3 + $0x188] sm:$0xff]
    %v779 = vld [vmem:[#allocation3 + $0x190] sm:$0xff]
    %v780 = vld [vmem:[#allocation3 + $0x198] sm:$0xff]
    %v781 = vld [vmem:[#allocation3 + $0x1a0] sm:$0xff]
    %v782 = vld [vmem:[#allocation3 + $0x1a8] sm:$0xff]
    %v783 = vld [vmem:[#allocation3 + $0x1b0] sm:$0xff]
    %v784 = vld [vmem:[#allocation3 + $0x1b8] sm:$0xff]
    %v785 = vld [vmem:[#allocation3 + $0x1c0] sm:$0xff]
    %v786 = vld [vmem:[#allocation3 + $0x1c8] sm:$0xff]
    %v787 = vld [vmem:[#allocation3 + $0x1d0] sm:$0xff]
    %v788 = vld [vmem:[#allocation3 + $0x1d8] sm:$0xff]
    %v789 = vld [vmem:[#allocation3 + $0x1e0] sm:$0xff]
    %v790 = vld [vmem:[#allocation3 + $0x1e8] sm:$0xff]
    %v791 = vld [vmem:[#allocation3 + $0x1f0] sm:$0xff]
    %v792 = vld [vmem:[#allocation3 + $0x1f8] sm:$0xff]
    %v793 = vld [vmem:[#allocation3 + $0x200] sm:$0xff]
    %v794 = vld [vmem:[#allocation3 + $0x208] sm:$0xff]
    %v795 = vld [vmem:[#allocation3 + $0x210] sm:$0xff]
    %v796 = vld [vmem:[#allocation3 + $0x218] sm:$0xff]
    %v797 = vld [vmem:[#allocation3 + $0x220] sm:$0xff]
    %v798 = vld [vmem:[#allocation3 + $0x228] sm:$0xff]
    %v799 = vld [vmem:[#allocation3 + $0x230] sm:$0xff]
    %v800 = vld [vmem:[#allocation3 + $0x238] sm:$0xff]
    %v801 = vld [vmem:[%s5] sm:$0xff]
    %803 = vset.pattern.permute.xlu0 0
    %804 = vperm.xlu0 %803, %v801
    %v805 = vpop.permute.xlu0 %804
    %vm807 = vcmask 130048
    %v809 = vsel %vm807, %v728, 0
    %811 = vmatpush.msra.mxu0 %v789
    %812 = vmatpush.msra.mxu0 %v785
    %813 = vmatpush.msra.mxu0 %v781
    %814 = vmatpush.msra.mxu0 %v777
    %815 = vmatpush.msra.mxu0 %v773
    %816 = vmatpush.msra.mxu0 %v769
    %817 = vmatpush.msra.mxu0 %v765
    %818 = vmatpush.msra.mxu0 %v761
    %819 = vmatpush.msra.mxu0 %v757
    %820 = vmatpush.msra.mxu0 %v753
    %821 = vmatpush.msra.mxu0 %v749
    %822 = vmatpush.msra.mxu0 %v745
    %823 = vmatpush.msra.mxu0 %v741
    %824 = vmatpush.msra.mxu0 %v737
    %825 = vmatpush.msra.mxu0 %v733
    %826 = vmatpush.msra.mxu0 %v729
    %827 = vmatmul.f32.gmra.mxu0 %v727
    %v828 = vpop.f32.mrf.mxu0
    %v829 = vadd.f32 %v805, %v828
    %830 = vdwg.mxu0
    %831 = vmatpush.msra.mxu0 0.0
    %832 = vmatpush.msra.mxu0 0.0
    %833 = vmatpush.msra.mxu0 0.0
    %834 = vmatpush.msra.mxu0 0.0
    %835 = vmatpush.msra.mxu0 0.0
    %836 = vmatpush.msra.mxu0 0.0
    %837 = vmatpush.msra.mxu0 0.0
    %838 = vmatpush.msra.mxu0 0.0
    %839 = vmatpush.msra.mxu0 0.0
    %840 = vmatpush.msra.mxu0 0.0
    %841 = vmatpush.msra.mxu0 0.0
    %842 = vmatpush.msra.mxu0 0.0
    %843 = vmatpush.msra.mxu0 0.0
    %844 = vmatpush.msra.mxu0 0.0
    %845 = vmatpush.msra.mxu0 %v797
    %846 = vmatpush.msra.mxu0 %v793
    %847 = vmatmul.f32.gmra.mxu0 %v809
    %v848 = vpop.f32.mrf.mxu0
    %v849 = vadd.f32 %v829, %v848
    %850 = vdwg.mxu0
    %851 = vmatpush.msra.mxu0 %v790
    %852 = vmatpush.msra.mxu0 %v786
    %853 = vmatpush.msra.mxu0 %v782
    %854 = vmatpush.msra.mxu0 %v778
    %855 = vmatpush.msra.mxu0 %v774
    %856 = vmatpush.msra.mxu0 %v770
    %857 = vmatpush.msra.mxu0 %v766
    %858 = vmatpush.msra.mxu0 %v762
    %859 = vmatpush.msra.mxu0 %v758
    %860 = vmatpush.msra.mxu0 %v754
    %861 = vmatpush.msra.mxu0 %v750
    %862 = vmatpush.msra.mxu0 %v746
    %863 = vmatpush.msra.mxu0 %v742
    %864 = vmatpush.msra.mxu0 %v738
    %865 = vmatpush.msra.mxu0 %v734
    %866 = vmatpush.msra.mxu0 %v730
    %867 = vmatmul.f32.gmra.mxu0 %v727
    %v868 = vpop.f32.mrf.mxu0
    %v869 = vadd.f32 %v805, %v868
    %870 = vdwg.mxu0
    %871 = vmatpush.msra.mxu0 0.0
    %872 = vmatpush.msra.mxu0 0.0
    %873 = vmatpush.msra.mxu0 0.0
    %874 = vmatpush.msra.mxu0 0.0
    %875 = vmatpush.msra.mxu0 0.0
    %876 = vmatpush.msra.mxu0 0.0
    %877 = vmatpush.msra.mxu0 0.0
    %878 = vmatpush.msra.mxu0 0.0
    %879 = vmatpush.msra.mxu0 0.0
    %880 = vmatpush.msra.mxu0 0.0
    %881 = vmatpush.msra.mxu0 0.0
    %882 = vmatpush.msra.mxu0 0.0
    %883 = vmatpush.msra.mxu0 0.0
    %884 = vmatpush.msra.mxu0 0.0
    %885 = vmatpush.msra.mxu0 %v798
    %886 = vmatpush.msra.mxu0 %v794
    %887 = vmatmul.f32.gmra.mxu0 %v809
    %v888 = vpop.f32.mrf.mxu0
    %v889 = vadd.f32 %v869, %v888
    %890 = vdwg.mxu0
    %891 = vmatpush.msra.mxu0 %v791
    %892 = vmatpush.msra.mxu0 %v787
    %893 = vmatpush.msra.mxu0 %v783
    %894 = vmatpush.msra.mxu0 %v779
    %895 = vmatpush.msra.mxu0 %v775
    %896 = vmatpush.msra.mxu0 %v771
    %897 = vmatpush.msra.mxu0 %v767
    %898 = vmatpush.msra.mxu0 %v763
    %899 = vmatpush.msra.mxu0 %v759
    %900 = vmatpush.msra.mxu0 %v755
    %901 = vmatpush.msra.mxu0 %v751
    %902 = vmatpush.msra.mxu0 %v747
    %903 = vmatpush.msra.mxu0 %v743
    %904 = vmatpush.msra.mxu0 %v739
    %905 = vmatpush.msra.mxu0 %v735
    %906 = vmatpush.msra.mxu0 %v731
    %907 = vmatmul.f32.gmra.mxu0 %v727
    %v908 = vpop.f32.mrf.mxu0
    %v909 = vadd.f32 %v805, %v908
    %910 = vdwg.mxu0
    %911 = vmatpush.msra.mxu0 0.0
    %912 = vmatpush.msra.mxu0 0.0
    %913 = vmatpush.msra.mxu0 0.0
    %914 = vmatpush.msra.mxu0 0.0
    %915 = vmatpush.msra.mxu0 0.0
    %916 = vmatpush.msra.mxu0 0.0
    %917 = vmatpush.msra.mxu0 0.0
    %918 = vmatpush.msra.mxu0 0.0
    %919 = vmatpush.msra.mxu0 0.0
    %920 = vmatpush.msra.mxu0 0.0
    %921 = vmatpush.msra.mxu0 0.0
    %922 = vmatpush.msra.mxu0 0.0
    %923 = vmatpush.msra.mxu0 0.0
    %924 = vmatpush.msra.mxu0 0.0
    %925 = vmatpush.msra.mxu0 %v799
    %926 = vmatpush.msra.mxu0 %v795
    %927 = vmatmul.f32.gmra.mxu0 %v809
    %v928 = vpop.f32.mrf.mxu0
    %v929 = vadd.f32 %v909, %v928
    %930 = vdwg.mxu0
    %931 = vmatpush.msra.mxu0 %v792
    %932 = vmatpush.msra.mxu0 %v788
    %933 = vmatpush.msra.mxu0 %v784
    %934 = vmatpush.msra.mxu0 %v780
    %935 = vmatpush.msra.mxu0 %v776
    %936 = vmatpush.msra.mxu0 %v772
    %937 = vmatpush.msra.mxu0 %v768
    %938 = vmatpush.msra.mxu0 %v764
    %939 = vmatpush.msra.mxu0 %v760
    %940 = vmatpush.msra.mxu0 %v756
    %941 = vmatpush.msra.mxu0 %v752
    %942 = vmatpush.msra.mxu0 %v748
    %943 = vmatpush.msra.mxu0 %v744
    %944 = vmatpush.msra.mxu0 %v740
    %945 = vmatpush.msra.mxu0 %v736
    %946 = vmatpush.msra.mxu0 %v732
    %947 = vmatmul.f32.gmra.mxu0 %v727
    %v948 = vpop.f32.mrf.mxu0
    %v949 = vadd.f32 %v805, %v948
    %950 = vdwg.mxu0
    %951 = vmatpush.msra.mxu0 0.0
    %952 = vmatpush.msra.mxu0 0.0
    %953 = vmatpush.msra.mxu0 0.0
    %954 = vmatpush.msra.mxu0 0.0
    %955 = vmatpush.msra.mxu0 0.0
    %956 = vmatpush.msra.mxu0 0.0
    %957 = vmatpush.msra.mxu0 0.0
    %958 = vmatpush.msra.mxu0 0.0
    %959 = vmatpush.msra.mxu0 0.0
    %960 = vmatpush.msra.mxu0 0.0
    %961 = vmatpush.msra.mxu0 0.0
    %962 = vmatpush.msra.mxu0 0.0
    %963 = vmatpush.msra.mxu0 0.0
    %964 = vmatpush.msra.mxu0 0.0
    %965 = vmatpush.msra.mxu0 %v800
    %966 = vmatpush.msra.mxu0 %v796
    %967 = vmatmul.f32.gmra.mxu0 %v809
    %v968 = vpop.f32.mrf.mxu0
    %v969 = vadd.f32 %v949, %v968
    %970 = vdwg.mxu0
    %v971 = vmax.f32 %v849, 0.0
    %v972 = vmax.f32 %v889, 0.0
    %v973 = vmax.f32 %v929, 0.0
    %v974 = vmax.f32 %v969, 0.0
    %975 = vst [vmem:[#allocation2 + $0x40] sm:$0xff] %v971
    %976 = vst [vmem:[#allocation2 + $0x48] sm:$0xff] %v972
    %977 = vst [vmem:[#allocation2 + $0x50] sm:$0xff] %v973
    %978 = vst [vmem:[#allocation2 + $0x58] sm:$0xff] %v974
    %979 = vrot.lane.b32.xlu0 %v971, 17
    %v980 = vpop.permute.xlu0 %979
    %981 = vrot.lane.b32.xlu0 %v972, 17
    %v982 = vpop.permute.xlu0 %981
    %983 = vrot.lane.b32.xlu0 %v973, 17
    %v984 = vpop.permute.xlu0 %983
    %985 = vrot.lane.b32.xlu0 %v974, 17
    %v986 = vpop.permute.xlu0 %985
    %v987 = vsel %vm97, %v984, %v986
    %v988 = vsel %vm97, %v982, %v984
    %v989 = vsel %vm97, %v980, %v982
    %v990 = vsel %vm97, %v986, %v980
    %v991 = vld [vmem:[#allocation7] sm:$0xf]
    %v993 = vperm.slane %v991, 0
    %v994 = vperm.slane %v991, 1
    %v995 = vperm.slane %v991, 2
    %v996 = vperm.slane %v991, 3
    %v1001 = vmul.f32 %v990, %v993
    %v1002 = vmul.f32 %v989, %v994
    %v1003 = vmul.f32 %v988, %v995
    %v1004 = vmul.f32 %v987, %v996
    %1005 = vst [vmem:[#allocation3 + $0x240] sm:$0xff] %v1001
    %1006 = vst [vmem:[#allocation3 + $0x248] sm:$0xff] %v1002
    %1007 = vst [vmem:[#allocation3 + $0x250] sm:$0xff] %v1003
    %1008 = vst [vmem:[#allocation3 + $0x258] sm:$0xff] %v1004
    %1009 = vrot.lane.b32.xlu0 %v971, 16
    %v1010 = vpop.permute.xlu0 %1009
    %1011 = vrot.lane.b32.xlu0 %v972, 16
    %v1012 = vpop.permute.xlu0 %1011
    %1013 = vrot.lane.b32.xlu0 %v973, 16
    %v1014 = vpop.permute.xlu0 %1013
    %1015 = vrot.lane.b32.xlu0 %v974, 16
    %v1016 = vpop.permute.xlu0 %1015
    %v1017 = vsel %vm128, %v1014, %v1016
    %v1018 = vsel %vm128, %v1012, %v1014
    %v1019 = vsel %vm128, %v1010, %v1012
    %v1020 = vsel %vm128, %v1016, %v1010
    %v1021 = vld [vmem:[%s133] sm:$0xf]
    %v1023 = vperm.slane %v1021, 0
    %v1024 = vperm.slane %v1021, 1
    %v1025 = vperm.slane %v1021, 2
    %v1026 = vperm.slane %v1021, 3
    %v1031 = vmul.f32 %v1020, %v1023
    %v1032 = vmul.f32 %v1019, %v1024
    %v1033 = vmul.f32 %v1018, %v1025
    %v1034 = vmul.f32 %v1017, %v1026
    %1035 = vst [vmem:[#allocation3 + $0x260] sm:$0xff] %v1031
    %1036 = vst [vmem:[#allocation3 + $0x268] sm:$0xff] %v1032
    %1037 = vst [vmem:[#allocation3 + $0x270] sm:$0xff] %v1033
    %1038 = vst [vmem:[#allocation3 + $0x278] sm:$0xff] %v1034
    %1039 = vrot.lane.b32.xlu0 %v971, 15
    %v1040 = vpop.permute.xlu0 %1039
    %1041 = vrot.lane.b32.xlu0 %v972, 15
    %v1042 = vpop.permute.xlu0 %1041
    %1043 = vrot.lane.b32.xlu0 %v973, 15
    %v1044 = vpop.permute.xlu0 %1043
    %1045 = vrot.lane.b32.xlu0 %v974, 15
    %v1046 = vpop.permute.xlu0 %1045
    %v1047 = vsel %vm160, %v1044, %v1046
    %v1048 = vsel %vm160, %v1042, %v1044
    %v1049 = vsel %vm160, %v1040, %v1042
    %v1050 = vsel %vm160, %v1046, %v1040
    %v1051 = vld [vmem:[%s165] sm:$0xf]
    %v1053 = vperm.slane %v1051, 0
    %v1054 = vperm.slane %v1051, 1
    %v1055 = vperm.slane %v1051, 2
    %v1056 = vperm.slane %v1051, 3
    %v1061 = vmul.f32 %v1050, %v1053
    %v1062 = vmul.f32 %v1049, %v1054
    %v1063 = vmul.f32 %v1048, %v1055
    %v1064 = vmul.f32 %v1047, %v1056
    %1065 = vst [vmem:[#allocation3 + $0x280] sm:$0xff] %v1061
    %1066 = vst [vmem:[#allocation3 + $0x288] sm:$0xff] %v1062
    %1067 = vst [vmem:[#allocation3 + $0x290] sm:$0xff] %v1063
    %1068 = vst [vmem:[#allocation3 + $0x298] sm:$0xff] %v1064
    %1069 = vrot.lane.b32.xlu0 %v971, 1
    %v1070 = vpop.permute.xlu0 %1069
    %1071 = vrot.lane.b32.xlu0 %v972, 1
    %v1072 = vpop.permute.xlu0 %1071
    %1073 = vrot.lane.b32.xlu0 %v973, 1
    %v1074 = vpop.permute.xlu0 %1073
    %1075 = vrot.lane.b32.xlu0 %v974, 1
    %v1076 = vpop.permute.xlu0 %1075
    %v1077 = vsel %vm192, %v1074, %v1076
    %v1078 = vsel %vm192, %v1072, %v1074
    %v1079 = vsel %vm192, %v1070, %v1072
    %v1080 = vsel %vm192, %v1076, %v1070
    %v1081 = vld [vmem:[%s197] sm:$0xf]
    %v1083 = vperm.slane %v1081, 0
    %v1084 = vperm.slane %v1081, 1
    %v1085 = vperm.slane %v1081, 2
    %v1086 = vperm.slane %v1081, 3
    %v1091 = vmul.f32 %v1080, %v1083
    %v1092 = vmul.f32 %v1079, %v1084
    %v1093 = vmul.f32 %v1078, %v1085
    %v1094 = vmul.f32 %v1077, %v1086
    %1095 = vst [vmem:[#allocation3 + $0x2a0] sm:$0xff] %v1091
    %1096 = vst [vmem:[#allocation3 + $0x2a8] sm:$0xff] %v1092
    %1097 = vst [vmem:[#allocation3 + $0x2b0] sm:$0xff] %v1093
    %1098 = vst [vmem:[#allocation3 + $0x2b8] sm:$0xff] %v1094
    %1099 = vst [vmem:[#allocation3 + $0x2c0] sm:$0xff] %v971
    %1100 = vst [vmem:[#allocation3 + $0x2c8] sm:$0xff] %v972
    %1101 = vst [vmem:[#allocation3 + $0x2d0] sm:$0xff] %v973
    %1102 = vst [vmem:[#allocation3 + $0x2d8] sm:$0xff] %v974
    %1103 = vrot.lane.b32.xlu0 %v971, 127
    %v1104 = vpop.permute.xlu0 %1103
    %1105 = vrot.lane.b32.xlu0 %v972, 127
    %v1106 = vpop.permute.xlu0 %1105
    %1107 = vrot.lane.b32.xlu0 %v973, 127
    %v1108 = vpop.permute.xlu0 %1107
    %1109 = vrot.lane.b32.xlu0 %v974, 127
    %v1110 = vpop.permute.xlu0 %1109
    %v1111 = vsel %vm228, %v1108, %v1110
    %v1112 = vsel %vm228, %v1106, %v1108
    %v1113 = vsel %vm228, %v1104, %v1106
    %v1114 = vsel %vm228, %v1110, %v1104
    %v1115 = vld [vmem:[%s233] sm:$0xf]
    %v1117 = vperm.slane %v1115, 0
    %v1118 = vperm.slane %v1115, 1
    %v1119 = vperm.slane %v1115, 2
    %v1120 = vperm.slane %v1115, 3
    %v1125 = vmul.f32 %v1113, %v1117
    %v1126 = vmul.f32 %v1112, %v1118
    %v1127 = vmul.f32 %v1111, %v1119
    %v1128 = vmul.f32 %v1114, %v1120
    %1129 = vst [vmem:[#allocation3 + $0x2e0] sm:$0xff] %v1125
    %1130 = vst [vmem:[#allocation3 + $0x2e8] sm:$0xff] %v1126
    %1131 = vst [vmem:[#allocation3 + $0x2f0] sm:$0xff] %v1127
    %1132 = vst [vmem:[#allocation3 + $0x2f8] sm:$0xff] %v1128
    %1133 = vrot.lane.b32.xlu0 %v971, 113
    %v1134 = vpop.permute.xlu0 %1133
    %1135 = vrot.lane.b32.xlu0 %v972, 113
    %v1136 = vpop.permute.xlu0 %1135
    %1137 = vrot.lane.b32.xlu0 %v973, 113
    %v1138 = vpop.permute.xlu0 %1137
    %1139 = vrot.lane.b32.xlu0 %v974, 113
    %v1140 = vpop.permute.xlu0 %1139
    %v1141 = vsel %vm260, %v1138, %v1140
    %v1142 = vsel %vm260, %v1136, %v1138
    %v1143 = vsel %vm260, %v1134, %v1136
    %v1144 = vsel %vm260, %v1140, %v1134
    %v1145 = vld [vmem:[%s265] sm:$0xf]
    %v1147 = vperm.slane %v1145, 0
    %v1148 = vperm.slane %v1145, 1
    %v1149 = vperm.slane %v1145, 2
    %v1150 = vperm.slane %v1145, 3
    %v1155 = vmul.f32 %v1143, %v1147
    %v1156 = vmul.f32 %v1142, %v1148
    %v1157 = vmul.f32 %v1141, %v1149
    %v1158 = vmul.f32 %v1144, %v1150
    %1159 = vst [vmem:[#allocation3 + $0x300] sm:$0xff] %v1155
    %1160 = vst [vmem:[#allocation3 + $0x308] sm:$0xff] %v1156
    %1161 = vst [vmem:[#allocation3 + $0x310] sm:$0xff] %v1157
    %1162 = vst [vmem:[#allocation3 + $0x318] sm:$0xff] %v1158
    %1163 = vrot.lane.b32.xlu0 %v971, 112
    %v1164 = vpop.permute.xlu0 %1163
    %1165 = vrot.lane.b32.xlu0 %v972, 112
    %v1166 = vpop.permute.xlu0 %1165
    %1167 = vrot.lane.b32.xlu0 %v973, 112
    %v1168 = vpop.permute.xlu0 %1167
    %1169 = vrot.lane.b32.xlu0 %v974, 112
    %v1170 = vpop.permute.xlu0 %1169
    %v1171 = vsel %vm292, %v1168, %v1170
    %v1172 = vsel %vm292, %v1166, %v1168
    %v1173 = vsel %vm292, %v1164, %v1166
    %v1174 = vsel %vm292, %v1170, %v1164
    %v1175 = vld [vmem:[%s297] sm:$0xf]
    %v1177 = vperm.slane %v1175, 0
    %v1178 = vperm.slane %v1175, 1
    %v1179 = vperm.slane %v1175, 2
    %v1180 = vperm.slane %v1175, 3
    %v1185 = vmul.f32 %v1173, %v1177
    %v1186 = vmul.f32 %v1172, %v1178
    %v1187 = vmul.f32 %v1171, %v1179
    %v1188 = vmul.f32 %v1174, %v1180
    %1189 = vst [vmem:[#allocation3 + $0x320] sm:$0xff] %v1185
    %1190 = vst [vmem:[#allocation3 + $0x328] sm:$0xff] %v1186
    %1191 = vst [vmem:[#allocation3 + $0x330] sm:$0xff] %v1187
    %1192 = vst [vmem:[#allocation3 + $0x338] sm:$0xff] %v1188
    %1193 = vrot.lane.b32.xlu0 %v971, 111
    %v1194 = vpop.permute.xlu0 %1193
    %1195 = vrot.lane.b32.xlu0 %v972, 111
    %v1196 = vpop.permute.xlu0 %1195
    %1197 = vrot.lane.b32.xlu0 %v973, 111
    %v1198 = vpop.permute.xlu0 %1197
    %1199 = vrot.lane.b32.xlu0 %v974, 111
    %v1200 = vpop.permute.xlu0 %1199
    %v1201 = vsel %vm324, %v1198, %v1200
    %v1202 = vsel %vm324, %v1196, %v1198
    %v1203 = vsel %vm324, %v1194, %v1196
    %v1204 = vsel %vm324, %v1200, %v1194
    %v1205 = vld [vmem:[%s329] sm:$0xf]
    %v1207 = vperm.slane %v1205, 0
    %v1208 = vperm.slane %v1205, 1
    %v1209 = vperm.slane %v1205, 2
    %v1210 = vperm.slane %v1205, 3
    %v1215 = vmul.f32 %v1203, %v1207
    %v1216 = vmul.f32 %v1202, %v1208
    %v1217 = vmul.f32 %v1201, %v1209
    %v1218 = vmul.f32 %v1204, %v1210
    %1219 = vst [vmem:[#allocation3 + $0x340] sm:$0xff] %v1215
    %1220 = vst [vmem:[#allocation3 + $0x348] sm:$0xff] %v1216
    %1221 = vst [vmem:[#allocation3 + $0x350] sm:$0xff] %v1217
    %1222 = vst [vmem:[#allocation3 + $0x358] sm:$0xff] %v1218
    %v1223 = vld [vmem:[#allocation9] sm:$0xff]
    %v1224 = vld [vmem:[#allocation9 + $0x8] sm:$0xff]
    %v1225 = vld [vmem:[#allocation3] sm:$0xff]
    %v1226 = vld [vmem:[#allocation3 + $0x8] sm:$0xff]
    %v1227 = vld [vmem:[#allocation3 + $0x10] sm:$0xff]
    %v1228 = vld [vmem:[#allocation3 + $0x18] sm:$0xff]
    %v1229 = vld [vmem:[#allocation3 + $0x20] sm:$0xff]
    %v1230 = vld [vmem:[#allocation3 + $0x28] sm:$0xff]
    %v1231 = vld [vmem:[#allocation3 + $0x30] sm:$0xff]
    %v1232 = vld [vmem:[#allocation3 + $0x38] sm:$0xff]
    %v1233 = vld [vmem:[#allocation3 + $0x40] sm:$0xff]
    %v1234 = vld [vmem:[#allocation3 + $0x48] sm:$0xff]
    %v1235 = vld [vmem:[#allocation3 + $0x50] sm:$0xff]
    %v1236 = vld [vmem:[#allocation3 + $0x58] sm:$0xff]
    %v1237 = vld [vmem:[#allocation3 + $0x60] sm:$0xff]
    %v1238 = vld [vmem:[#allocation3 + $0x68] sm:$0xff]
    %v1239 = vld [vmem:[#allocation3 + $0x70] sm:$0xff]
    %v1240 = vld [vmem:[#allocation3 + $0x78] sm:$0xff]
    %v1241 = vld [vmem:[#allocation3 + $0x80] sm:$0xff]
    %v1242 = vld [vmem:[#allocation3 + $0x88] sm:$0xff]
    %v1243 = vld [vmem:[#allocation3 + $0x90] sm:$0xff]
    %v1244 = vld [vmem:[#allocation3 + $0x98] sm:$0xff]
    %v1245 = vld [vmem:[#allocation3 + $0xa0] sm:$0xff]
    %v1246 = vld [vmem:[#allocation3 + $0xa8] sm:$0xff]
    %v1247 = vld [vmem:[#allocation3 + $0xb0] sm:$0xff]
    %v1248 = vld [vmem:[#allocation3 + $0xb8] sm:$0xff]
    %v1249 = vld [vmem:[#allocation3 + $0xc0] sm:$0xff]
    %v1250 = vld [vmem:[#allocation3 + $0xc8] sm:$0xff]
    %v1251 = vld [vmem:[#allocation3 + $0xd0] sm:$0xff]
    %v1252 = vld [vmem:[#allocation3 + $0xd8] sm:$0xff]
    %v1253 = vld [vmem:[#allocation3 + $0xe0] sm:$0xff]
    %v1254 = vld [vmem:[#allocation3 + $0xe8] sm:$0xff]
    %v1255 = vld [vmem:[#allocation3 + $0xf0] sm:$0xff]
    %v1256 = vld [vmem:[#allocation3 + $0xf8] sm:$0xff]
    %v1257 = vld [vmem:[#allocation3 + $0x100] sm:$0xff]
    %v1258 = vld [vmem:[#allocation3 + $0x108] sm:$0xff]
    %v1259 = vld [vmem:[#allocation3 + $0x110] sm:$0xff]
    %v1260 = vld [vmem:[#allocation3 + $0x118] sm:$0xff]
    %v1261 = vld [vmem:[#allocation3 + $0x120] sm:$0xff]
    %v1262 = vld [vmem:[#allocation3 + $0x128] sm:$0xff]
    %v1263 = vld [vmem:[#allocation3 + $0x130] sm:$0xff]
    %v1264 = vld [vmem:[#allocation3 + $0x138] sm:$0xff]
    %v1265 = vld [vmem:[#allocation3 + $0x140] sm:$0xff]
    %v1266 = vld [vmem:[#allocation3 + $0x148] sm:$0xff]
    %v1267 = vld [vmem:[#allocation3 + $0x150] sm:$0xff]
    %v1268 = vld [vmem:[#allocation3 + $0x158] sm:$0xff]
    %v1269 = vld [vmem:[#allocation3 + $0x160] sm:$0xff]
    %v1270 = vld [vmem:[#allocation3 + $0x168] sm:$0xff]
    %v1271 = vld [vmem:[#allocation3 + $0x170] sm:$0xff]
    %v1272 = vld [vmem:[#allocation3 + $0x178] sm:$0xff]
    %v1273 = vld [vmem:[#allocation3 + $0x180] sm:$0xff]
    %v1274 = vld [vmem:[#allocation3 + $0x188] sm:$0xff]
    %v1275 = vld [vmem:[#allocation3 + $0x190] sm:$0xff]
    %v1276 = vld [vmem:[#allocation3 + $0x198] sm:$0xff]
    %v1277 = vld [vmem:[#allocation3 + $0x1a0] sm:$0xff]
    %v1278 = vld [vmem:[#allocation3 + $0x1a8] sm:$0xff]
    %v1279 = vld [vmem:[#allocation3 + $0x1b0] sm:$0xff]
    %v1280 = vld [vmem:[#allocation3 + $0x1b8] sm:$0xff]
    %v1281 = vld [vmem:[#allocation3 + $0x1c0] sm:$0xff]
    %v1282 = vld [vmem:[#allocation3 + $0x1c8] sm:$0xff]
    %v1283 = vld [vmem:[#allocation3 + $0x1d0] sm:$0xff]
    %v1284 = vld [vmem:[#allocation3 + $0x1d8] sm:$0xff]
    %v1285 = vld [vmem:[#allocation3 + $0x1e0] sm:$0xff]
    %v1286 = vld [vmem:[#allocation3 + $0x1e8] sm:$0xff]
    %v1287 = vld [vmem:[#allocation3 + $0x1f0] sm:$0xff]
    %v1288 = vld [vmem:[#allocation3 + $0x1f8] sm:$0xff]
    %v1289 = vld [vmem:[#allocation3 + $0x200] sm:$0xff]
    %v1290 = vld [vmem:[#allocation3 + $0x208] sm:$0xff]
    %v1291 = vld [vmem:[#allocation3 + $0x210] sm:$0xff]
    %v1292 = vld [vmem:[#allocation3 + $0x218] sm:$0xff]
    %v1293 = vld [vmem:[#allocation3 + $0x220] sm:$0xff]
    %v1294 = vld [vmem:[#allocation3 + $0x228] sm:$0xff]
    %v1295 = vld [vmem:[#allocation3 + $0x230] sm:$0xff]
    %v1296 = vld [vmem:[#allocation3 + $0x238] sm:$0xff]
    %v1297 = vld [vmem:[#allocation3 + $0x240] sm:$0xff]
    %v1298 = vld [vmem:[#allocation3 + $0x248] sm:$0xff]
    %v1299 = vld [vmem:[#allocation3 + $0x250] sm:$0xff]
    %v1300 = vld [vmem:[#allocation3 + $0x258] sm:$0xff]
    %v1301 = vld [vmem:[#allocation3 + $0x260] sm:$0xff]
    %v1302 = vld [vmem:[#allocation3 + $0x268] sm:$0xff]
    %v1303 = vld [vmem:[#allocation3 + $0x270] sm:$0xff]
    %v1304 = vld [vmem:[#allocation3 + $0x278] sm:$0xff]
    %v1305 = vld [vmem:[#allocation3 + $0x280] sm:$0xff]
    %v1306 = vld [vmem:[#allocation3 + $0x288] sm:$0xff]
    %v1307 = vld [vmem:[#allocation3 + $0x290] sm:$0xff]
    %v1308 = vld [vmem:[#allocation3 + $0x298] sm:$0xff]
    %v1309 = vld [vmem:[#allocation3 + $0x2a0] sm:$0xff]
    %v1310 = vld [vmem:[#allocation3 + $0x2a8] sm:$0xff]
    %v1311 = vld [vmem:[#allocation3 + $0x2b0] sm:$0xff]
    %v1312 = vld [vmem:[#allocation3 + $0x2b8] sm:$0xff]
    %v1313 = vld [vmem:[#allocation3 + $0x2c0] sm:$0xff]
    %v1314 = vld [vmem:[#allocation3 + $0x2c8] sm:$0xff]
    %v1315 = vld [vmem:[#allocation3 + $0x2d0] sm:$0xff]
    %v1316 = vld [vmem:[#allocation3 + $0x2d8] sm:$0xff]
    %v1317 = vld [vmem:[#allocation3 + $0x2e0] sm:$0xff]
    %v1318 = vld [vmem:[#allocation3 + $0x2e8] sm:$0xff]
    %v1319 = vld [vmem:[#allocation3 + $0x2f0] sm:$0xff]
    %v1320 = vld [vmem:[#allocation3 + $0x2f8] sm:$0xff]
    %v1321 = vld [vmem:[#allocation3 + $0x300] sm:$0xff]
    %v1322 = vld [vmem:[#allocation3 + $0x308] sm:$0xff]
    %v1323 = vld [vmem:[#allocation3 + $0x310] sm:$0xff]
    %v1324 = vld [vmem:[#allocation3 + $0x318] sm:$0xff]
    %v1325 = vld [vmem:[#allocation3 + $0x320] sm:$0xff]
    %v1326 = vld [vmem:[#allocation3 + $0x328] sm:$0xff]
    %v1327 = vld [vmem:[#allocation3 + $0x330] sm:$0xff]
    %v1328 = vld [vmem:[#allocation3 + $0x338] sm:$0xff]
    %v1329 = vld [vmem:[#allocation3 + $0x340] sm:$0xff]
    %v1330 = vld [vmem:[#allocation3 + $0x348] sm:$0xff]
    %v1331 = vld [vmem:[#allocation3 + $0x350] sm:$0xff]
    %v1332 = vld [vmem:[#allocation3 + $0x358] sm:$0xff]
    %v1333 = vld [vmem:[%s7] sm:$0xff]
    %1335 = vset.pattern.permute.xlu0 0
    %1336 = vperm.xlu0 %1335, %v1333
    %v1337 = vpop.permute.xlu0 %1336
    %vm1339 = vcmask 719872
    %v1341 = vsel %vm1339, %v1224, 0
    %1343 = vmatpush.msra.mxu0 %v1285
    %1344 = vmatpush.msra.mxu0 %v1281
    %1345 = vmatpush.msra.mxu0 %v1277
    %1346 = vmatpush.msra.mxu0 %v1273
    %1347 = vmatpush.msra.mxu0 %v1269
    %1348 = vmatpush.msra.mxu0 %v1265
    %1349 = vmatpush.msra.mxu0 %v1261
    %1350 = vmatpush.msra.mxu0 %v1257
    %1351 = vmatpush.msra.mxu0 %v1253
    %1352 = vmatpush.msra.mxu0 %v1249
    %1353 = vmatpush.msra.mxu0 %v1245
    %1354 = vmatpush.msra.mxu0 %v1241
    %1355 = vmatpush.msra.mxu0 %v1237
    %1356 = vmatpush.msra.mxu0 %v1233
    %1357 = vmatpush.msra.mxu0 %v1229
    %1358 = vmatpush.msra.mxu0 %v1225
    %1359 = vmatmul.f32.gmra.mxu0 %v1223
    %v1360 = vpop.f32.mrf.mxu0
    %v1361 = vadd.f32 %v1337, %v1360
    %1362 = vdwg.mxu0
    %1363 = vmatpush.msra.mxu0 0.0
    %1364 = vmatpush.msra.mxu0 0.0
    %1365 = vmatpush.msra.mxu0 0.0
    %1366 = vmatpush.msra.mxu0 0.0
    %1367 = vmatpush.msra.mxu0 0.0
    %1368 = vmatpush.msra.mxu0 %v1329
    %1369 = vmatpush.msra.mxu0 %v1325
    %1370 = vmatpush.msra.mxu0 %v1321
    %1371 = vmatpush.msra.mxu0 %v1317
    %1372 = vmatpush.msra.mxu0 %v1313
    %1373 = vmatpush.msra.mxu0 %v1309
    %1374 = vmatpush.msra.mxu0 %v1305
    %1375 = vmatpush.msra.mxu0 %v1301
    %1376 = vmatpush.msra.mxu0 %v1297
    %1377 = vmatpush.msra.mxu0 %v1293
    %1378 = vmatpush.msra.mxu0 %v1289
    %1379 = vmatmul.f32.gmra.mxu0 %v1341
    %v1380 = vpop.f32.mrf.mxu0
    %v1381 = vadd.f32 %v1361, %v1380
    %1382 = vdwg.mxu0
    %1383 = vmatpush.msra.mxu0 %v1286
    %1384 = vmatpush.msra.mxu0 %v1282
    %1385 = vmatpush.msra.mxu0 %v1278
    %1386 = vmatpush.msra.mxu0 %v1274
    %1387 = vmatpush.msra.mxu0 %v1270
    %1388 = vmatpush.msra.mxu0 %v1266
    %1389 = vmatpush.msra.mxu0 %v1262
    %1390 = vmatpush.msra.mxu0 %v1258
    %1391 = vmatpush.msra.mxu0 %v1254
    %1392 = vmatpush.msra.mxu0 %v1250
    %1393 = vmatpush.msra.mxu0 %v1246
    %1394 = vmatpush.msra.mxu0 %v1242
    %1395 = vmatpush.msra.mxu0 %v1238
    %1396 = vmatpush.msra.mxu0 %v1234
    %1397 = vmatpush.msra.mxu0 %v1230
    %1398 = vmatpush.msra.mxu0 %v1226
    %1399 = vmatmul.f32.gmra.mxu0 %v1223
    %v1400 = vpop.f32.mrf.mxu0
    %v1401 = vadd.f32 %v1337, %v1400
    %1402 = vdwg.mxu0
    %1403 = vmatpush.msra.mxu0 0.0
    %1404 = vmatpush.msra.mxu0 0.0
    %1405 = vmatpush.msra.mxu0 0.0
    %1406 = vmatpush.msra.mxu0 0.0
    %1407 = vmatpush.msra.mxu0 0.0
    %1408 = vmatpush.msra.mxu0 %v1330
    %1409 = vmatpush.msra.mxu0 %v1326
    %1410 = vmatpush.msra.mxu0 %v1322
    %1411 = vmatpush.msra.mxu0 %v1318
    %1412 = vmatpush.msra.mxu0 %v1314
    %1413 = vmatpush.msra.mxu0 %v1310
    %1414 = vmatpush.msra.mxu0 %v1306
    %1415 = vmatpush.msra.mxu0 %v1302
    %1416 = vmatpush.msra.mxu0 %v1298
    %1417 = vmatpush.msra.mxu0 %v1294
    %1418 = vmatpush.msra.mxu0 %v1290
    %1419 = vmatmul.f32.gmra.mxu0 %v1341
    %v1420 = vpop.f32.mrf.mxu0
    %v1421 = vadd.f32 %v1401, %v1420
    %1422 = vdwg.mxu0
    %1423 = vmatpush.msra.mxu0 %v1287
    %1424 = vmatpush.msra.mxu0 %v1283
    %1425 = vmatpush.msra.mxu0 %v1279
    %1426 = vmatpush.msra.mxu0 %v1275
    %1427 = vmatpush.msra.mxu0 %v1271
    %1428 = vmatpush.msra.mxu0 %v1267
    %1429 = vmatpush.msra.mxu0 %v1263
    %1430 = vmatpush.msra.mxu0 %v1259
    %1431 = vmatpush.msra.mxu0 %v1255
    %1432 = vmatpush.msra.mxu0 %v1251
    %1433 = vmatpush.msra.mxu0 %v1247
    %1434 = vmatpush.msra.mxu0 %v1243
    %1435 = vmatpush.msra.mxu0 %v1239
    %1436 = vmatpush.msra.mxu0 %v1235
    %1437 = vmatpush.msra.mxu0 %v1231
    %1438 = vmatpush.msra.mxu0 %v1227
    %1439 = vmatmul.f32.gmra.mxu0 %v1223
    %v1440 = vpop.f32.mrf.mxu0
    %v1441 = vadd.f32 %v1337, %v1440
    %1442 = vdwg.mxu0
    %1443 = vmatpush.msra.mxu0 0.0
    %1444 = vmatpush.msra.mxu0 0.0
    %1445 = vmatpush.msra.mxu0 0.0
    %1446 = vmatpush.msra.mxu0 0.0
    %1447 = vmatpush.msra.mxu0 0.0
    %1448 = vmatpush.msra.mxu0 %v1331
    %1449 = vmatpush.msra.mxu0 %v1327
    %1450 = vmatpush.msra.mxu0 %v1323
    %1451 = vmatpush.msra.mxu0 %v1319
    %1452 = vmatpush.msra.mxu0 %v1315
    %1453 = vmatpush.msra.mxu0 %v1311
    %1454 = vmatpush.msra.mxu0 %v1307
    %1455 = vmatpush.msra.mxu0 %v1303
    %1456 = vmatpush.msra.mxu0 %v1299
    %1457 = vmatpush.msra.mxu0 %v1295
    %1458 = vmatpush.msra.mxu0 %v1291
    %1459 = vmatmul.f32.gmra.mxu0 %v1341
    %v1460 = vpop.f32.mrf.mxu0
    %v1461 = vadd.f32 %v1441, %v1460
    %1462 = vdwg.mxu0
    %1463 = vmatpush.msra.mxu0 %v1288
    %1464 = vmatpush.msra.mxu0 %v1284
    %1465 = vmatpush.msra.mxu0 %v1280
    %1466 = vmatpush.msra.mxu0 %v1276
    %1467 = vmatpush.msra.mxu0 %v1272
    %1468 = vmatpush.msra.mxu0 %v1268
    %1469 = vmatpush.msra.mxu0 %v1264
    %1470 = vmatpush.msra.mxu0 %v1260
    %1471 = vmatpush.msra.mxu0 %v1256
    %1472 = vmatpush.msra.mxu0 %v1252
    %1473 = vmatpush.msra.mxu0 %v1248
    %1474 = vmatpush.msra.mxu0 %v1244
    %1475 = vmatpush.msra.mxu0 %v1240
    %1476 = vmatpush.msra.mxu0 %v1236
    %1477 = vmatpush.msra.mxu0 %v1232
    %1478 = vmatpush.msra.mxu0 %v1228
    %1479 = vmatmul.f32.gmra.mxu0 %v1223
    %v1480 = vpop.f32.mrf.mxu0
    %v1481 = vadd.f32 %v1337, %v1480
    %1482 = vdwg.mxu0
    %1483 = vmatpush.msra.mxu0 0.0
    %1484 = vmatpush.msra.mxu0 0.0
    %1485 = vmatpush.msra.mxu0 0.0
    %1486 = vmatpush.msra.mxu0 0.0
    %1487 = vmatpush.msra.mxu0 0.0
    %1488 = vmatpush.msra.mxu0 %v1332
    %1489 = vmatpush.msra.mxu0 %v1328
    %1490 = vmatpush.msra.mxu0 %v1324
    %1491 = vmatpush.msra.mxu0 %v1320
    %1492 = vmatpush.msra.mxu0 %v1316
    %1493 = vmatpush.msra.mxu0 %v1312
    %1494 = vmatpush.msra.mxu0 %v1308
    %1495 = vmatpush.msra.mxu0 %v1304
    %1496 = vmatpush.msra.mxu0 %v1300
    %1497 = vmatpush.msra.mxu0 %v1296
    %1498 = vmatpush.msra.mxu0 %v1292
    %1499 = vmatmul.f32.gmra.mxu0 %v1341
    %v1500 = vpop.f32.mrf.mxu0
    %v1501 = vadd.f32 %v1481, %v1500
    %1502 = vdwg.mxu0
    %v1503 = vmax.f32 %v1381, 0.0
    %v1504 = vmax.f32 %v1421, 0.0
    %v1505 = vmax.f32 %v1461, 0.0
    %v1506 = vmax.f32 %v1501, 0.0
    %1507 = vst [vmem:[#allocation2 + $0x60] sm:$0xff] %v1503
    %1508 = vst [vmem:[#allocation2 + $0x68] sm:$0xff] %v1504
    %1509 = vst [vmem:[#allocation2 + $0x70] sm:$0xff] %v1505
    %1510 = vst [vmem:[#allocation2 + $0x78] sm:$0xff] %v1506
    %v1511 = vld [vmem:[%s8] sm:$0xf]
    %v1512 = vld [vmem:[#allocation2] sm:$0xff]
    %v1513 = vld [vmem:[#allocation2 + $0x8] sm:$0xff]
    %v1514 = vld [vmem:[#allocation2 + $0x10] sm:$0xff]
    %v1515 = vld [vmem:[#allocation2 + $0x18] sm:$0xff]
    %v1516 = vld [vmem:[#allocation2 + $0x20] sm:$0xff]
    %v1517 = vld [vmem:[#allocation2 + $0x28] sm:$0xff]
    %v1518 = vld [vmem:[#allocation2 + $0x30] sm:$0xff]
    %v1519 = vld [vmem:[#allocation2 + $0x38] sm:$0xff]
    %v1520 = vld [vmem:[#allocation2 + $0x40] sm:$0xff]
    %v1521 = vld [vmem:[#allocation2 + $0x48] sm:$0xff]
    %v1522 = vld [vmem:[#allocation2 + $0x50] sm:$0xff]
    %v1523 = vld [vmem:[#allocation2 + $0x58] sm:$0xff]
    %v1524 = vld [vmem:[#allocation2 + $0x60] sm:$0xff]
    %v1525 = vld [vmem:[#allocation2 + $0x68] sm:$0xff]
    %v1526 = vld [vmem:[#allocation2 + $0x70] sm:$0xff]
    %v1527 = vld [vmem:[#allocation2 + $0x78] sm:$0xff]
    %v1528 = vld [vmem:[%s9] sm:$0xf]
    %1530 = vset.pattern.permute.xlu0 0
    %1531 = vperm.xlu0 %1530, %v1528
    %v1532 = vpop.permute.xlu0 %1531
    %vm1534 = vcmask 261120
    %v1536 = vsel %vm1534, %v1511, 0
    %1538 = vmatpush.msra.mxu0 0.0
    %1539 = vmatpush.msra.mxu0 0.0
    %1540 = vmatpush.msra.mxu0 0.0
    %1541 = vmatpush.msra.mxu0 0.0
    %1542 = vmatpush.msra.mxu0 0.0
    %1543 = vmatpush.msra.mxu0 0.0
    %1544 = vmatpush.msra.mxu0 0.0
    %1545 = vmatpush.msra.mxu0 0.0
    %1546 = vmatpush.msra.mxu0 0.0
    %1547 = vmatpush.msra.mxu0 0.0
    %1548 = vmatpush.msra.mxu0 0.0
    %1549 = vmatpush.msra.mxu0 0.0
    %1550 = vmatpush.msra.mxu0 %v1524
    %1551 = vmatpush.msra.mxu0 %v1520
    %1552 = vmatpush.msra.mxu0 %v1516
    %1553 = vmatpush.msra.mxu0 %v1512
    %1554 = vmatmul.f32.gmra.mxu0 %v1536
    %v1555 = vpop.f32.mrf.mxu0
    %v1556 = vadd.f32 %v1532, %v1555
    %1557 = vdwg.mxu0
    %1558 = vmatpush.msra.mxu0 0.0
    %1559 = vmatpush.msra.mxu0 0.0
    %1560 = vmatpush.msra.mxu0 0.0
    %1561 = vmatpush.msra.mxu0 0.0
    %1562 = vmatpush.msra.mxu0 0.0
    %1563 = vmatpush.msra.mxu0 0.0
    %1564 = vmatpush.msra.mxu0 0.0
    %1565 = vmatpush.msra.mxu0 0.0
    %1566 = vmatpush.msra.mxu0 0.0
    %1567 = vmatpush.msra.mxu0 0.0
    %1568 = vmatpush.msra.mxu0 0.0
    %1569 = vmatpush.msra.mxu0 0.0
    %1570 = vmatpush.msra.mxu0 %v1525
    %1571 = vmatpush.msra.mxu0 %v1521
    %1572 = vmatpush.msra.mxu0 %v1517
    %1573 = vmatpush.msra.mxu0 %v1513
    %1574 = vmatmul.f32.gmra.mxu0 %v1536
    %v1575 = vpop.f32.mrf.mxu0
    %v1576 = vadd.f32 %v1532, %v1575
    %1577 = vdwg.mxu0
    %1578 = vmatpush.msra.mxu0 0.0
    %1579 = vmatpush.msra.mxu0 0.0
    %1580 = vmatpush.msra.mxu0 0.0
    %1581 = vmatpush.msra.mxu0 0.0
    %1582 = vmatpush.msra.mxu0 0.0
    %1583 = vmatpush.msra.mxu0 0.0
    %1584 = vmatpush.msra.mxu0 0.0
    %1585 = vmatpush.msra.mxu0 0.0
    %1586 = vmatpush.msra.mxu0 0.0
    %1587 = vmatpush.msra.mxu0 0.0
    %1588 = vmatpush.msra.mxu0 0.0
    %1589 = vmatpush.msra.mxu0 0.0
    %1590 = vmatpush.msra.mxu0 %v1526
    %1591 = vmatpush.msra.mxu0 %v1522
    %1592 = vmatpush.msra.mxu0 %v1518
    %1593 = vmatpush.msra.mxu0 %v1514
    %1594 = vmatmul.f32.gmra.mxu0 %v1536
    %v1595 = vpop.f32.mrf.mxu0
    %v1596 = vadd.f32 %v1532, %v1595
    %1597 = vdwg.mxu0
    %1598 = vmatpush.msra.mxu0 0.0
    %1599 = vmatpush.msra.mxu0 0.0
    %1600 = vmatpush.msra.mxu0 0.0
    %1601 = vmatpush.msra.mxu0 0.0
    %1602 = vmatpush.msra.mxu0 0.0
    %1603 = vmatpush.msra.mxu0 0.0
    %1604 = vmatpush.msra.mxu0 0.0
    %1605 = vmatpush.msra.mxu0 0.0
    %1606 = vmatpush.msra.mxu0 0.0
    %1607 = vmatpush.msra.mxu0 0.0
    %1608 = vmatpush.msra.mxu0 0.0
    %1609 = vmatpush.msra.mxu0 0.0
    %1610 = vmatpush.msra.mxu0 %v1527
    %1611 = vmatpush.msra.mxu0 %v1523
    %1612 = vmatpush.msra.mxu0 %v1519
    %1613 = vmatpush.msra.mxu0 %v1515
    %1614 = vmatmul.f32.gmra.mxu0 %v1536
    %v1615 = vpop.f32.mrf.mxu0
    %v1616 = vadd.f32 %v1532, %v1615
    %1617 = vdwg.mxu0
    %v1618 = vadd.f32 %v1556, %v79
    %v1619 = vadd.f32 %v1576, %v80
    %v1620 = vadd.f32 %v1596, %v81
    %v1621 = vadd.f32 %v1616, %v82
    %v1626 = vrot.slane %v1619, 4
    %v1627 = vrot.slane %v1621, 4
    %vm1628 = vcmask 1043456
    %v1629 = vsel %vm1628, %v1618, %v1626
    %v1630 = vsel %vm1628, %v1620, %v1627
    %1633 = vst [vmem:[#allocation10] sm:$0xff] %v1629
    %1634 = vst [vmem:[#allocation10 + $0x8] sm:$0xff] %v1630
    // Predicated region
    $region54: #{tpu_custom_call.1} parent=1 // pred_check
      _
    $region55: #{tpu_custom_call.1} parent=1 // pred_check_branch
      %1636 = sbr.rel (0) target = $region57
    $region56: #{tpu_custom_call.1} parent=1 // pred_region
      %1638 = vsyncadd [#allocation6], 0
      %s1640 = sshll.u32 [#allocation10], 4
      %s1641 = int_to_ptr.vmem [resolvable:$true] %s1640
      %s1642 = sshll.u32 %s10, 4
      %s1643 = int_to_ptr.hbm [resolvable:$true] %s1642
      %1645 = dma.vmem_to_hbm [thread:$0]  %s1641, 256, %s1643, [#allocation6]
    $region57: #{tpu_custom_call.1} parent=1 // pred_fallthru
      _
    // Predicated region
    $region58: #{tpu_custom_call.1} parent=1 // pred_check
      _
    $region59: #{tpu_custom_call.1} parent=1 // pred_check_branch
      %1647 = sbr.rel (0) target = $region61
    $region60: #{tpu_custom_call.1} parent=1 // pred_region
      %1649 = dma.done [#allocation6], 256
    $region61: #{tpu_custom_call.1} parent=1 // pred_fallthru
      _
    %1650 = vsyncpa [#allocation5], 1
    %1651 = vsyncpa [#allocation8], 1
    %1652 = vsyncpa [#allocation6], 1

</llo_original>
